<compile_context>
chip_gen: v6e
topology: v6e:2x2x1
jax: 0.10.0
libtpu: 0.0.40
codegen_flags: <defaults>
</compile_context>

<pallas_src>
import math

import jax
import jax.numpy as jnp
from jax.experimental import pallas as pl
from jax.experimental.pallas import tpu as pltpu

_BN_EPS = 1e-5
_GELU_K = math.sqrt(2.0 / math.pi)


def _gelu_tanh(x):
    # tanh-form GELU: the transcendental goes to the otherwise-idle EUP slot.
    # |gelu_tanh - gelu_erf| is ~3e-4 per element (see tolerance note in main).
    return 0.5 * x * (1.0 + jnp.tanh(_GELU_K * (x + 0.044715 * (x * x * x))))


def lpi_kernel(x_ref, w1_ref, b1_ref, w2_ref, b2_ref, gamma_ref, beta_ref,
               o_ref, pad_ref, y_ref, s1_ref, s2_ref):
    B, H, W, Cb = x_ref.shape
    f32 = jnp.float32

    # ---- hoist per-channel parameters; pre-broadcast tap weights across the
    #      W (sublane) axis once, outside the hot loops ----------------------
    w1t = [[w1_ref[i, j, :, :].astype(f32) for j in range(3)] for i in range(3)]
    w2t = [[w2_ref[i, j, :, :].astype(f32) for j in range(3)] for i in range(3)]
    w1b = [[jnp.broadcast_to(w.reshape(1, 1, Cb), (1, W, Cb)) for w in row] for row in w1t]
    w2b = [[jnp.broadcast_to(w.reshape(1, 1, Cb), (1, W, Cb)) for w in row] for row in w2t]
    w2sum = sum(w2t[i][j] for i in range(3) for j in range(3)).reshape(1, 1, Cb)

    b1 = b1_ref[...].astype(f32).reshape(1, 1, Cb)
    b2 = b2_ref[...].astype(f32).reshape(1, 1, Cb)
    gamma = gamma_ref[...].astype(f32).reshape(1, 1, Cb)
    beta = beta_ref[...].astype(f32).reshape(1, 1, Cb)
    b1b = jnp.broadcast_to(b1, (1, W, Cb))

    # Shared padded slab: zero once per channel block (required: its halo is
    # repurposed with a different value for conv2 below).  Interior is fully
    # overwritten for every batch element.
    pad_ref[...] = jnp.zeros_like(pad_ref)
    s1_ref[...] = jnp.zeros_like(s1_ref)
    s2_ref[...] = jnp.zeros_like(s2_ref)

    def dw3x3(wb):
        """Depthwise 3x3 conv of the padded slab; 9 static slices of pad_ref."""
        acc = pad_ref[0:H, 0:W, :] * wb[0][0]
        for dh in range(3):
            for dw in range(3):
                if dh == 0 and dw == 0:
                    continue
                acc = acc + pad_ref[dh:dh + H, dw:dw + W, :] * wb[dh][dw]
        return acc

    # ---- pass 1: conv1 -> GELU, streamed per batch element; accumulate the
    #      BatchNorm batch statistics on the fly ----------------------------
    @pl.loop(0, B)
    def _(b):
        pad_ref[1:H + 1, 1:W + 1, :] = x_ref[b].astype(f32)
        y = _gelu_tanh(dw3x3(w1b) + b1b)                       # (H, W, Cb)
        y_ref[b] = y
        s1_ref[...] += jnp.sum(y, axis=(0, 1), keepdims=True)
        s2_ref[...] += jnp.sum(y * y, axis=(0, 1), keepdims=True)

    # ---- BatchNorm2d (training-mode forward): per-channel batch stats over
    #      (B,H,W), biased variance, folded with gamma/beta into scale+shift.
    inv_n = 1.0 / float(B * H * W)
    mean = s1_ref[...] * inv_n
    var = jnp.maximum(s2_ref[...] * inv_n - mean * mean, 0.0)
    scale = gamma * jax.lax.rsqrt(var + _BN_EPS)               # (1,1,Cb)
    shift = beta - mean * scale

    # conv2 epilogue constant (BN shift folded through the 9-tap weight sum)
    const = shift * w2sum + b2
    # Halo value such that scale*halo + shift == 0, i.e. padding positions act
    # as zeros of the BN output.  Guarded against gamma == 0 (pathological).
    ok = jnp.abs(scale) > 1e-30
    halo = jnp.where(ok, -shift / jnp.where(ok, scale, 1.0), 0.0)  # (1,1,Cb)

    # Repurpose the slab halo for conv2 (once per channel block).
    pad_ref[0:1, :, :] = jnp.broadcast_to(halo, (1, W + 2, Cb))
    pad_ref[H + 1:H + 2, :, :] = jnp.broadcast_to(halo, (1, W + 2, Cb))
    pad_ref[:, 0:1, :] = jnp.broadcast_to(halo, (H + 2, 1, Cb))
    pad_ref[:, W + 1:W + 2, :] = jnp.broadcast_to(halo, (H + 2, 1, Cb))

    scale_b = jnp.broadcast_to(scale, (1, W, Cb))
    const_b = jnp.broadcast_to(const, (1, W, Cb))

    # ---- pass 2: conv2 with the BN affine folded into the epilogue --------
    @pl.loop(0, B)
    def _(b):
        pad_ref[1:H + 1, 1:W + 1, :] = y_ref[b]
        out = dw3x3(w2b) * scale_b + const_b
        o_ref[b] = out.astype(o_ref.dtype)


def lpi_forward(x, H, W, params, *, c_block=128):
    """x: (B, N, C) with N = H*W, token n <-> (h, w) = (n // W, n % W)."""
    B, N, C = x.shape
    assert N == H * W
    w1, b1, w2, b2, gamma, beta = params

    # Channel block: 128 lanes when C divides evenly, else one full-C block.
    # TODO(synk): C % 128 != 0 (e.g. XCiT-tiny C=192) falls back to a single
    # full-C block: 75% lane util and a larger per-block footprint.
    c_blk = c_block if C % c_block == 0 else C
    grid = (C // c_blk,)

    # (B, N, C) -> (B, H, W, C): a pure reshape, zero HBM traffic (the old
    # (H, W, B, C) layout needed two full transpose round trips).
    xk = x.reshape(B, H, W, C)

    # ---- honest per-block VMEM footprint vs. the device's capacity --------
    itemsize = x.dtype.itemsize
    io_block = B * H * W * c_blk * itemsize
    est = (
        2 * io_block                              # double-buffered input blocks
        + 2 * io_block                            # double-buffered output blocks
        + B * H * W * c_blk * 4                   # GELU-output scratch (f32)
        + (H + 2) * (W + 2) * c_blk * 4           # shared padded slab scratch
        + 8 * H * W * c_blk * 4                   # per-slab f32 temporaries
        + (2 << 20)                               # weights / vectors / misc
    )
    cap = 64 << 20                                # v7x physical VMEM (worst case)
    try:
        cap = int(getattr(pltpu.get_tpu_info(), "vmem_capacity_bytes", cap))
    except Exception:
        pass
    budget = max(cap - (8 << 20), 16 << 20)
    if est > budget:
        # TODO(synk): add an inner batch/row tiling level for very large blocks.
        raise ValueError(
            f"LPI block footprint {est / 2**20:.1f} MiB exceeds the VMEM budget "
            f"{budget / 2**20:.1f} MiB; reduce B*H*W or c_block.")
    vmem_limit = int(min(budget, max(est + (8 << 20), 32 << 20)))

    blk_io = pl.BlockSpec((B, H, W, c_blk), lambda c: (0, 0, 0, c))
    blk_w = pl.BlockSpec((3, 3, 1, c_blk), lambda c: (0, 0, 0, c))
    blk_v = pl.BlockSpec((1, c_blk), lambda c: (0, c))

    out = pl.pallas_call(
        lpi_kernel,
        out_shape=jax.ShapeDtypeStruct((B, H, W, C), x.dtype),
        grid_spec=pltpu.PrefetchScalarGridSpec(
            num_scalar_prefetch=0,
            grid=grid,
            in_specs=[blk_io, blk_w, blk_v, blk_w, blk_v, blk_v, blk_v],
            out_specs=blk_io,
            scratch_shapes=[
                pltpu.VMEM((H + 2, W + 2, c_blk), jnp.float32),  # shared padded slab
                pltpu.VMEM((B, H, W, c_blk), jnp.float32),       # GELU output (conv2 input)
                pltpu.VMEM((1, 1, c_blk), jnp.float32),          # BN sum
                pltpu.VMEM((1, 1, c_blk), jnp.float32),          # BN sum of squares
            ],
        ),
        compiler_params=pltpu.CompilerParams(
            # TODO(synk): on v7x use pltpu.CORE_PARALLEL / pl.core_map to
            # guarantee the channel blocks split across the two TensorCores.
            dimension_semantics=("parallel",),
            vmem_limit_bytes=vmem_limit,
        ),
    )(xk, w1, b1, w2, b2, gamma, beta)

    # (B, H, W, C) -> (B, N, C): pure reshape, zero HBM traffic.
    return out.reshape(B, N, C)


def lpi_reference(x, H, W, params):
    """Pure-JAX reference (same math as the PyTorch module's forward)."""
    B, N, C = x.shape
    w1, b1, w2, b2, gamma, beta = params
    xi = x.reshape(B, H, W, C).astype(jnp.float32)

    def dwconv(v, w, b):
        out = jax.lax.conv_general_dilated(
            v, w.astype(jnp.float32), window_strides=(1, 1), padding="SAME",
            dimension_numbers=("NHWC", "HWIO", "NHWC"),
            feature_group_count=C)
        return out + b.reshape(1, 1, 1, C)

    y = dwconv(xi, w1, b1)
    y = jax.nn.gelu(y, approximate=False)   # torch.nn.GELU() default (exact erf)
    mean = y.mean(axis=(0, 1, 2), keepdims=True)
    var = ((y - mean) ** 2).mean(axis=(0, 1, 2), keepdims=True)
    y = (y - mean) * jax.lax.rsqrt(var + _BN_EPS)
    y = y * gamma.reshape(1, 1, 1, C) + beta.reshape(1, 1, 1, C)
    y = dwconv(y, w2, b2)
    return y.reshape(B, N, C).astype(x.dtype)


if __name__ == "__main__":
    key = jax.random.PRNGKey(0)
    # Small but lane/sublane-dense demo shapes: W=8 fills the sublane axis,
    # C=256 gives two 128-lane channel blocks (exercises the channel grid).
    B, C, H, W = 8, 256, 8, 8
    N = H * W
    ks = jax.random.split(key, 7)

    x = jax.random.normal(ks[0], (B, N, C), jnp.float32)

    # nn.Conv2d(C, C, 3, padding=1, groups=C): weight stored directly in
    # kernel layout (3, 3, 1, C); bias / BN affine as (1, C).
    w1 = 0.2 * jax.random.normal(ks[1], (3, 3, 1, C), jnp.float32)
    b1 = 0.05 * jax.random.normal(ks[2], (1, C), jnp.float32)
    w2 = 0.2 * jax.random.normal(ks[3], (3, 3, 1, C), jnp.float32)
    b2 = 0.05 * jax.random.normal(ks[4], (1, C), jnp.float32)
    gamma = 1.0 + 0.1 * jax.random.normal(ks[5], (1, C), jnp.float32)
    beta = 0.1 * jax.random.normal(ks[6], (1, C), jnp.float32)
    params = (w1, b1, w2, b2, gamma, beta)

    out = lpi_forward(x, H, W, params)
    jax.block_until_ready(out)
    assert out.shape == (B, N, C) and out.dtype == jnp.float32

    ref = lpi_reference(x, H, W, params)
    max_err = float(jnp.max(jnp.abs(out - ref)))
    # The kernel uses tanh-form GELU (EUP) while the reference uses the exact
    # erf form: ~3e-4 per-element deviation, amplified a few x through the BN
    # rsqrt and conv2 -> worst case a few 1e-3 at the output.
    assert max_err < 1e-2, f"max abs err vs reference: {max_err}"
    print("KERNEL_OK")
</pallas_src>

<mosaic_0001>
module attributes {stable_mosaic.version = 11 : i64} {
  func.func @lpi_kernel(%arg0: i32, %arg1: memref<8x8x8x128xf32, #tpu.memory_space<vmem>>, %arg2: memref<3x3x1x128xf32, #tpu.memory_space<vmem>>, %arg3: memref<1x128xf32, #tpu.memory_space<vmem>>, %arg4: memref<3x3x1x128xf32, #tpu.memory_space<vmem>>, %arg5: memref<1x128xf32, #tpu.memory_space<vmem>>, %arg6: memref<1x128xf32, #tpu.memory_space<vmem>>, %arg7: memref<1x128xf32, #tpu.memory_space<vmem>>, %arg8: memref<8x8x8x128xf32, #tpu.memory_space<vmem>>, %arg9: memref<10x10x128xf32, #tpu.memory_space<vmem>>, %arg10: memref<8x8x8x128xf32, #tpu.memory_space<vmem>>, %arg11: memref<1x1x128xf32, #tpu.memory_space<vmem>>, %arg12: memref<1x1x128xf32, #tpu.memory_space<vmem>>) attributes {dimension_semantics = [#tpu.dimension_semantics<parallel>], iteration_bounds = array<i64: 2>, scalar_prefetch = 0 : i64, scratch_operands = 4 : i64, tpu.core_type = #tpu.core_type<tc>, window_params = [{transform_indices = @transform_0, window_bounds = array<i64: 8, 8, 8, 128>}, {transform_indices = @transform_1, window_bounds = array<i64: 3, 3, 1, 128>}, {transform_indices = @transform_2, window_bounds = array<i64: 1, 128>}, {transform_indices = @transform_3, window_bounds = array<i64: 3, 3, 1, 128>}, {transform_indices = @transform_4, window_bounds = array<i64: 1, 128>}, {transform_indices = @transform_5, window_bounds = array<i64: 1, 128>}, {transform_indices = @transform_6, window_bounds = array<i64: 1, 128>}, {transform_indices = @transform_7, window_bounds = array<i64: 8, 8, 8, 128>}]} {
    %c0 = arith.constant 0 : index
    %c0_0 = arith.constant 0 : index
    %c0_1 = arith.constant 0 : index
    %c0_2 = arith.constant 0 : index
    %0 = vector.load %arg2[%c0, %c0_0, %c0_1, %c0_2] : memref<3x3x1x128xf32, #tpu.memory_space<vmem>>, vector<1x1x1x128xf32>
    %1 = vector.shape_cast %0 : vector<1x1x1x128xf32> to vector<1x128xf32>
    %c0_3 = arith.constant 0 : index
    %c1 = arith.constant 1 : index
    %c0_4 = arith.constant 0 : index
    %c0_5 = arith.constant 0 : index
    %2 = vector.load %arg2[%c0_3, %c1, %c0_4, %c0_5] : memref<3x3x1x128xf32, #tpu.memory_space<vmem>>, vector<1x1x1x128xf32>
    %3 = vector.shape_cast %2 : vector<1x1x1x128xf32> to vector<1x128xf32>
    %c0_6 = arith.constant 0 : index
    %c2 = arith.constant 2 : index
    %c0_7 = arith.constant 0 : index
    %c0_8 = arith.constant 0 : index
    %4 = vector.load %arg2[%c0_6, %c2, %c0_7, %c0_8] : memref<3x3x1x128xf32, #tpu.memory_space<vmem>>, vector<1x1x1x128xf32>
    %5 = vector.shape_cast %4 : vector<1x1x1x128xf32> to vector<1x128xf32>
    %c1_9 = arith.constant 1 : index
    %c0_10 = arith.constant 0 : index
    %c0_11 = arith.constant 0 : index
    %c0_12 = arith.constant 0 : index
    %6 = vector.load %arg2[%c1_9, %c0_10, %c0_11, %c0_12] : memref<3x3x1x128xf32, #tpu.memory_space<vmem>>, vector<1x1x1x128xf32>
    %7 = vector.shape_cast %6 : vector<1x1x1x128xf32> to vector<1x128xf32>
    %c1_13 = arith.constant 1 : index
    %c1_14 = arith.constant 1 : index
    %c0_15 = arith.constant 0 : index
    %c0_16 = arith.constant 0 : index
    %8 = vector.load %arg2[%c1_13, %c1_14, %c0_15, %c0_16] : memref<3x3x1x128xf32, #tpu.memory_space<vmem>>, vector<1x1x1x128xf32>
    %9 = vector.shape_cast %8 : vector<1x1x1x128xf32> to vector<1x128xf32>
    %c1_17 = arith.constant 1 : index
    %c2_18 = arith.constant 2 : index
    %c0_19 = arith.constant 0 : index
    %c0_20 = arith.constant 0 : index
    %10 = vector.load %arg2[%c1_17, %c2_18, %c0_19, %c0_20] : memref<3x3x1x128xf32, #tpu.memory_space<vmem>>, vector<1x1x1x128xf32>
    %11 = vector.shape_cast %10 : vector<1x1x1x128xf32> to vector<1x128xf32>
    %c2_21 = arith.constant 2 : index
    %c0_22 = arith.constant 0 : index
    %c0_23 = arith.constant 0 : index
    %c0_24 = arith.constant 0 : index
    %12 = vector.load %arg2[%c2_21, %c0_22, %c0_23, %c0_24] : memref<3x3x1x128xf32, #tpu.memory_space<vmem>>, vector<1x1x1x128xf32>
    %13 = vector.shape_cast %12 : vector<1x1x1x128xf32> to vector<1x128xf32>
    %c2_25 = arith.constant 2 : index
    %c1_26 = arith.constant 1 : index
    %c0_27 = arith.constant 0 : index
    %c0_28 = arith.constant 0 : index
    %14 = vector.load %arg2[%c2_25, %c1_26, %c0_27, %c0_28] : memref<3x3x1x128xf32, #tpu.memory_space<vmem>>, vector<1x1x1x128xf32>
    %15 = vector.shape_cast %14 : vector<1x1x1x128xf32> to vector<1x128xf32>
    %c2_29 = arith.constant 2 : index
    %c2_30 = arith.constant 2 : index
    %c0_31 = arith.constant 0 : index
    %c0_32 = arith.constant 0 : index
    %16 = vector.load %arg2[%c2_29, %c2_30, %c0_31, %c0_32] : memref<3x3x1x128xf32, #tpu.memory_space<vmem>>, vector<1x1x1x128xf32>
    %17 = vector.shape_cast %16 : vector<1x1x1x128xf32> to vector<1x128xf32>
    %c0_33 = arith.constant 0 : index
    %c0_34 = arith.constant 0 : index
    %c0_35 = arith.constant 0 : index
    %c0_36 = arith.constant 0 : index
    %18 = vector.load %arg4[%c0_33, %c0_34, %c0_35, %c0_36] : memref<3x3x1x128xf32, #tpu.memory_space<vmem>>, vector<1x1x1x128xf32>
    %19 = vector.shape_cast %18 : vector<1x1x1x128xf32> to vector<1x128xf32>
    %c0_37 = arith.constant 0 : index
    %c1_38 = arith.constant 1 : index
    %c0_39 = arith.constant 0 : index
    %c0_40 = arith.constant 0 : index
    %20 = vector.load %arg4[%c0_37, %c1_38, %c0_39, %c0_40] : memref<3x3x1x128xf32, #tpu.memory_space<vmem>>, vector<1x1x1x128xf32>
    %21 = vector.shape_cast %20 : vector<1x1x1x128xf32> to vector<1x128xf32>
    %c0_41 = arith.constant 0 : index
    %c2_42 = arith.constant 2 : index
    %c0_43 = arith.constant 0 : index
    %c0_44 = arith.constant 0 : index
    %22 = vector.load %arg4[%c0_41, %c2_42, %c0_43, %c0_44] : memref<3x3x1x128xf32, #tpu.memory_space<vmem>>, vector<1x1x1x128xf32>
    %23 = vector.shape_cast %22 : vector<1x1x1x128xf32> to vector<1x128xf32>
    %c1_45 = arith.constant 1 : index
    %c0_46 = arith.constant 0 : index
    %c0_47 = arith.constant 0 : index
    %c0_48 = arith.constant 0 : index
    %24 = vector.load %arg4[%c1_45, %c0_46, %c0_47, %c0_48] : memref<3x3x1x128xf32, #tpu.memory_space<vmem>>, vector<1x1x1x128xf32>
    %25 = vector.shape_cast %24 : vector<1x1x1x128xf32> to vector<1x128xf32>
    %c1_49 = arith.constant 1 : index
    %c1_50 = arith.constant 1 : index
    %c0_51 = arith.constant 0 : index
    %c0_52 = arith.constant 0 : index
    %26 = vector.load %arg4[%c1_49, %c1_50, %c0_51, %c0_52] : memref<3x3x1x128xf32, #tpu.memory_space<vmem>>, vector<1x1x1x128xf32>
    %27 = vector.shape_cast %26 : vector<1x1x1x128xf32> to vector<1x128xf32>
    %c1_53 = arith.constant 1 : index
    %c2_54 = arith.constant 2 : index
    %c0_55 = arith.constant 0 : index
    %c0_56 = arith.constant 0 : index
    %28 = vector.load %arg4[%c1_53, %c2_54, %c0_55, %c0_56] : memref<3x3x1x128xf32, #tpu.memory_space<vmem>>, vector<1x1x1x128xf32>
    %29 = vector.shape_cast %28 : vector<1x1x1x128xf32> to vector<1x128xf32>
    %c2_57 = arith.constant 2 : index
    %c0_58 = arith.constant 0 : index
    %c0_59 = arith.constant 0 : index
    %c0_60 = arith.constant 0 : index
    %30 = vector.load %arg4[%c2_57, %c0_58, %c0_59, %c0_60] : memref<3x3x1x128xf32, #tpu.memory_space<vmem>>, vector<1x1x1x128xf32>
    %31 = vector.shape_cast %30 : vector<1x1x1x128xf32> to vector<1x128xf32>
    %c2_61 = arith.constant 2 : index
    %c1_62 = arith.constant 1 : index
    %c0_63 = arith.constant 0 : index
    %c0_64 = arith.constant 0 : index
    %32 = vector.load %arg4[%c2_61, %c1_62, %c0_63, %c0_64] : memref<3x3x1x128xf32, #tpu.memory_space<vmem>>, vector<1x1x1x128xf32>
    %33 = vector.shape_cast %32 : vector<1x1x1x128xf32> to vector<1x128xf32>
    %c2_65 = arith.constant 2 : index
    %c2_66 = arith.constant 2 : index
    %c0_67 = arith.constant 0 : index
    %c0_68 = arith.constant 0 : index
    %34 = vector.load %arg4[%c2_65, %c2_66, %c0_67, %c0_68] : memref<3x3x1x128xf32, #tpu.memory_space<vmem>>, vector<1x1x1x128xf32>
    %35 = vector.shape_cast %34 : vector<1x1x1x128xf32> to vector<1x128xf32>
    %36 = vector.shape_cast %1 : vector<1x128xf32> to vector<1x1x128xf32>
    %37 = vector.shape_cast %36 : vector<1x1x128xf32> to vector<1x1x128xf32>
    %38 = vector.broadcast %37 : vector<1x1x128xf32> to vector<1x8x128xf32>
    %39 = vector.shape_cast %3 : vector<1x128xf32> to vector<1x1x128xf32>
    %40 = vector.shape_cast %39 : vector<1x1x128xf32> to vector<1x1x128xf32>
    %41 = vector.broadcast %40 : vector<1x1x128xf32> to vector<1x8x128xf32>
    %42 = vector.shape_cast %5 : vector<1x128xf32> to vector<1x1x128xf32>
    %43 = vector.shape_cast %42 : vector<1x1x128xf32> to vector<1x1x128xf32>
    %44 = vector.broadcast %43 : vector<1x1x128xf32> to vector<1x8x128xf32>
    %45 = vector.shape_cast %7 : vector<1x128xf32> to vector<1x1x128xf32>
    %46 = vector.shape_cast %45 : vector<1x1x128xf32> to vector<1x1x128xf32>
    %47 = vector.broadcast %46 : vector<1x1x128xf32> to vector<1x8x128xf32>
    %48 = vector.shape_cast %9 : vector<1x128xf32> to vector<1x1x128xf32>
    %49 = vector.shape_cast %48 : vector<1x1x128xf32> to vector<1x1x128xf32>
    %50 = vector.broadcast %49 : vector<1x1x128xf32> to vector<1x8x128xf32>
    %51 = vector.shape_cast %11 : vector<1x128xf32> to vector<1x1x128xf32>
    %52 = vector.shape_cast %51 : vector<1x1x128xf32> to vector<1x1x128xf32>
    %53 = vector.broadcast %52 : vector<1x1x128xf32> to vector<1x8x128xf32>
    %54 = vector.shape_cast %13 : vector<1x128xf32> to vector<1x1x128xf32>
    %55 = vector.shape_cast %54 : vector<1x1x128xf32> to vector<1x1x128xf32>
    %56 = vector.broadcast %55 : vector<1x1x128xf32> to vector<1x8x128xf32>
    %57 = vector.shape_cast %15 : vector<1x128xf32> to vector<1x1x128xf32>
    %58 = vector.shape_cast %57 : vector<1x1x128xf32> to vector<1x1x128xf32>
    %59 = vector.broadcast %58 : vector<1x1x128xf32> to vector<1x8x128xf32>
    %60 = vector.shape_cast %17 : vector<1x128xf32> to vector<1x1x128xf32>
    %61 = vector.shape_cast %60 : vector<1x1x128xf32> to vector<1x1x128xf32>
    %62 = vector.broadcast %61 : vector<1x1x128xf32> to vector<1x8x128xf32>
    %63 = vector.shape_cast %19 : vector<1x128xf32> to vector<1x1x128xf32>
    %64 = vector.shape_cast %63 : vector<1x1x128xf32> to vector<1x1x128xf32>
    %65 = vector.broadcast %64 : vector<1x1x128xf32> to vector<1x8x128xf32>
    %66 = vector.shape_cast %21 : vector<1x128xf32> to vector<1x1x128xf32>
    %67 = vector.shape_cast %66 : vector<1x1x128xf32> to vector<1x1x128xf32>
    %68 = vector.broadcast %67 : vector<1x1x128xf32> to vector<1x8x128xf32>
    %69 = vector.shape_cast %23 : vector<1x128xf32> to vector<1x1x128xf32>
    %70 = vector.shape_cast %69 : vector<1x1x128xf32> to vector<1x1x128xf32>
    %71 = vector.broadcast %70 : vector<1x1x128xf32> to vector<1x8x128xf32>
    %72 = vector.shape_cast %25 : vector<1x128xf32> to vector<1x1x128xf32>
    %73 = vector.shape_cast %72 : vector<1x1x128xf32> to vector<1x1x128xf32>
    %74 = vector.broadcast %73 : vector<1x1x128xf32> to vector<1x8x128xf32>
    %75 = vector.shape_cast %27 : vector<1x128xf32> to vector<1x1x128xf32>
    %76 = vector.shape_cast %75 : vector<1x1x128xf32> to vector<1x1x128xf32>
    %77 = vector.broadcast %76 : vector<1x1x128xf32> to vector<1x8x128xf32>
    %78 = vector.shape_cast %29 : vector<1x128xf32> to vector<1x1x128xf32>
    %79 = vector.shape_cast %78 : vector<1x1x128xf32> to vector<1x1x128xf32>
    %80 = vector.broadcast %79 : vector<1x1x128xf32> to vector<1x8x128xf32>
    %81 = vector.shape_cast %31 : vector<1x128xf32> to vector<1x1x128xf32>
    %82 = vector.shape_cast %81 : vector<1x1x128xf32> to vector<1x1x128xf32>
    %83 = vector.broadcast %82 : vector<1x1x128xf32> to vector<1x8x128xf32>
    %84 = vector.shape_cast %33 : vector<1x128xf32> to vector<1x1x128xf32>
    %85 = vector.shape_cast %84 : vector<1x1x128xf32> to vector<1x1x128xf32>
    %86 = vector.broadcast %85 : vector<1x1x128xf32> to vector<1x8x128xf32>
    %87 = vector.shape_cast %35 : vector<1x128xf32> to vector<1x1x128xf32>
    %88 = vector.shape_cast %87 : vector<1x1x128xf32> to vector<1x1x128xf32>
    %89 = vector.broadcast %88 : vector<1x1x128xf32> to vector<1x8x128xf32>
    %cst = arith.constant 0.000000e+00 : f32
    %90 = vector.broadcast %cst : f32 to vector<1x128xf32>
    %91 = arith.addf %90, %19 : vector<1x128xf32>
    %92 = arith.addf %91, %21 : vector<1x128xf32>
    %93 = arith.addf %92, %23 : vector<1x128xf32>
    %94 = arith.addf %93, %25 : vector<1x128xf32>
    %95 = arith.addf %94, %27 : vector<1x128xf32>
    %96 = arith.addf %95, %29 : vector<1x128xf32>
    %97 = arith.addf %96, %31 : vector<1x128xf32>
    %98 = arith.addf %97, %33 : vector<1x128xf32>
    %99 = arith.addf %98, %35 : vector<1x128xf32>
    %100 = vector.shape_cast %99 : vector<1x128xf32> to vector<1x1x128xf32>
    %c0_69 = arith.constant 0 : index
    %c0_70 = arith.constant 0 : index
    %101 = vector.load %arg3[%c0_69, %c0_70] : memref<1x128xf32, #tpu.memory_space<vmem>>, vector<1x128xf32>
    %102 = vector.shape_cast %101 : vector<1x128xf32> to vector<1x1x128xf32>
    %c0_71 = arith.constant 0 : index
    %c0_72 = arith.constant 0 : index
    %103 = vector.load %arg5[%c0_71, %c0_72] : memref<1x128xf32, #tpu.memory_space<vmem>>, vector<1x128xf32>
    %104 = vector.shape_cast %103 : vector<1x128xf32> to vector<1x1x128xf32>
    %c0_73 = arith.constant 0 : index
    %c0_74 = arith.constant 0 : index
    %105 = vector.load %arg6[%c0_73, %c0_74] : memref<1x128xf32, #tpu.memory_space<vmem>>, vector<1x128xf32>
    %106 = vector.shape_cast %105 : vector<1x128xf32> to vector<1x1x128xf32>
    %c0_75 = arith.constant 0 : index
    %c0_76 = arith.constant 0 : index
    %107 = vector.load %arg7[%c0_75, %c0_76] : memref<1x128xf32, #tpu.memory_space<vmem>>, vector<1x128xf32>
    %108 = vector.shape_cast %107 : vector<1x128xf32> to vector<1x1x128xf32>
    %109 = vector.shape_cast %102 : vector<1x1x128xf32> to vector<1x1x128xf32>
    %110 = vector.broadcast %109 : vector<1x1x128xf32> to vector<1x8x128xf32>
    %cst_77 = arith.constant 0.000000e+00 : f32
    %111 = vector.broadcast %cst_77 : f32 to vector<10x10x128xf32>
    %c0_78 = arith.constant 0 : index
    %c0_79 = arith.constant 0 : index
    %c0_80 = arith.constant 0 : index
    %112 = vector.load %arg9[%c0_78, %c0_79, %c0_80] : memref<10x10x128xf32, #tpu.memory_space<vmem>>, vector<10x10x128xf32>
    tpu.vector_store %arg9[%c0_78, %c0_79, %c0_80], %111 {strides = array<i32>} : memref<10x10x128xf32, #tpu.memory_space<vmem>>, vector<10x10x128xf32>,
    %cst_81 = arith.constant 0.000000e+00 : f32
    %113 = vector.broadcast %cst_81 : f32 to vector<1x1x128xf32>
    %c0_82 = arith.constant 0 : index
    %c0_83 = arith.constant 0 : index
    %c0_84 = arith.constant 0 : index
    %114 = vector.load %arg11[%c0_82, %c0_83, %c0_84] : memref<1x1x128xf32, #tpu.memory_space<vmem>>, vector<1x1x128xf32>
    tpu.vector_store %arg11[%c0_82, %c0_83, %c0_84], %113 {strides = array<i32>} : memref<1x1x128xf32, #tpu.memory_space<vmem>>, vector<1x1x128xf32>,
    %cst_85 = arith.constant 0.000000e+00 : f32
    %115 = vector.broadcast %cst_85 : f32 to vector<1x1x128xf32>
    %c0_86 = arith.constant 0 : index
    %c0_87 = arith.constant 0 : index
    %c0_88 = arith.constant 0 : index
    %116 = vector.load %arg12[%c0_86, %c0_87, %c0_88] : memref<1x1x128xf32, #tpu.memory_space<vmem>>, vector<1x1x128xf32>
    tpu.vector_store %arg12[%c0_86, %c0_87, %c0_88], %115 {strides = array<i32>} : memref<1x1x128xf32, #tpu.memory_space<vmem>>, vector<1x1x128xf32>,
    %c0_i32 = arith.constant 0 : i32
    %c8_i32 = arith.constant 8 : i32
    %117 = arith.addi %c0_i32, %c8_i32 : i32
    %c1_i32 = arith.constant 1 : i32
    scf.for %arg13 = %c0_i32 to %117 step %c1_i32  : i32 {
      %c1_i32_119 = arith.constant 1 : i32
      %163 = arith.muli %arg13, %c1_i32_119 : i32
      %c0_i32_120 = arith.constant 0 : i32
      %164 = arith.addi %c0_i32_120, %163 : i32
      %165 = arith.index_cast %164 : i32 to index
      %c0_121 = arith.constant 0 : index
      %c0_122 = arith.constant 0 : index
      %c0_123 = arith.constant 0 : index
      %166 = vector.load %arg1[%165, %c0_121, %c0_122, %c0_123] : memref<8x8x8x128xf32, #tpu.memory_space<vmem>>, vector<1x8x8x128xf32>
      %167 = vector.shape_cast %166 : vector<1x8x8x128xf32> to vector<8x8x128xf32>
      %c1_124 = arith.constant 1 : index
      %c1_125 = arith.constant 1 : index
      %c0_126 = arith.constant 0 : index
      %168 = vector.load %arg9[%c1_124, %c1_125, %c0_126] : memref<10x10x128xf32, #tpu.memory_space<vmem>>, vector<8x8x128xf32>
      tpu.vector_store %arg9[%c1_124, %c1_125, %c0_126], %167 {strides = array<i32>} : memref<10x10x128xf32, #tpu.memory_space<vmem>>, vector<8x8x128xf32>,
      %c0_127 = arith.constant 0 : index
      %c0_128 = arith.constant 0 : index
      %c0_129 = arith.constant 0 : index
      %169 = vector.load %arg9[%c0_127, %c0_128, %c0_129] : memref<10x10x128xf32, #tpu.memory_space<vmem>>, vector<8x8x128xf32>
      %170 = vector.broadcast %38 : vector<1x8x128xf32> to vector<8x8x128xf32>
      %171 = arith.mulf %169, %170 : vector<8x8x128xf32>
      %c0_130 = arith.constant 0 : index
      %c1_131 = arith.constant 1 : index
      %c0_132 = arith.constant 0 : index
      %172 = vector.load %arg9[%c0_130, %c1_131, %c0_132] : memref<10x10x128xf32, #tpu.memory_space<vmem>>, vector<8x8x128xf32>
      %173 = vector.broadcast %41 : vector<1x8x128xf32> to vector<8x8x128xf32>
      %174 = arith.mulf %172, %173 : vector<8x8x128xf32>
      %175 = arith.addf %171, %174 : vector<8x8x128xf32>
      %c0_133 = arith.constant 0 : index
      %c2_134 = arith.constant 2 : index
      %c0_135 = arith.constant 0 : index
      %176 = vector.load %arg9[%c0_133, %c2_134, %c0_135] : memref<10x10x128xf32, #tpu.memory_space<vmem>>, vector<8x8x128xf32>
      %177 = vector.broadcast %44 : vector<1x8x128xf32> to vector<8x8x128xf32>
      %178 = arith.mulf %176, %177 : vector<8x8x128xf32>
      %179 = arith.addf %175, %178 : vector<8x8x128xf32>
      %c1_136 = arith.constant 1 : index
      %c0_137 = arith.constant 0 : index
      %c0_138 = arith.constant 0 : index
      %180 = vector.load %arg9[%c1_136, %c0_137, %c0_138] : memref<10x10x128xf32, #tpu.memory_space<vmem>>, vector<8x8x128xf32>
      %181 = vector.broadcast %47 : vector<1x8x128xf32> to vector<8x8x128xf32>
      %182 = arith.mulf %180, %181 : vector<8x8x128xf32>
      %183 = arith.addf %179, %182 : vector<8x8x128xf32>
      %c1_139 = arith.constant 1 : index
      %c1_140 = arith.constant 1 : index
      %c0_141 = arith.constant 0 : index
      %184 = vector.load %arg9[%c1_139, %c1_140, %c0_141] : memref<10x10x128xf32, #tpu.memory_space<vmem>>, vector<8x8x128xf32>
      %185 = vector.broadcast %50 : vector<1x8x128xf32> to vector<8x8x128xf32>
      %186 = arith.mulf %184, %185 : vector<8x8x128xf32>
      %187 = arith.addf %183, %186 : vector<8x8x128xf32>
      %c1_142 = arith.constant 1 : index
      %c2_143 = arith.constant 2 : index
      %c0_144 = arith.constant 0 : index
      %188 = vector.load %arg9[%c1_142, %c2_143, %c0_144] : memref<10x10x128xf32, #tpu.memory_space<vmem>>, vector<8x8x128xf32>
      %189 = vector.broadcast %53 : vector<1x8x128xf32> to vector<8x8x128xf32>
      %190 = arith.mulf %188, %189 : vector<8x8x128xf32>
      %191 = arith.addf %187, %190 : vector<8x8x128xf32>
      %c2_145 = arith.constant 2 : index
      %c0_146 = arith.constant 0 : index
      %c0_147 = arith.constant 0 : index
      %192 = vector.load %arg9[%c2_145, %c0_146, %c0_147] : memref<10x10x128xf32, #tpu.memory_space<vmem>>, vector<8x8x128xf32>
      %193 = vector.broadcast %56 : vector<1x8x128xf32> to vector<8x8x128xf32>
      %194 = arith.mulf %192, %193 : vector<8x8x128xf32>
      %195 = arith.addf %191, %194 : vector<8x8x128xf32>
      %c2_148 = arith.constant 2 : index
      %c1_149 = arith.constant 1 : index
      %c0_150 = arith.constant 0 : index
      %196 = vector.load %arg9[%c2_148, %c1_149, %c0_150] : memref<10x10x128xf32, #tpu.memory_space<vmem>>, vector<8x8x128xf32>
      %197 = vector.broadcast %59 : vector<1x8x128xf32> to vector<8x8x128xf32>
      %198 = arith.mulf %196, %197 : vector<8x8x128xf32>
      %199 = arith.addf %195, %198 : vector<8x8x128xf32>
      %c2_151 = arith.constant 2 : index
      %c2_152 = arith.constant 2 : index
      %c0_153 = arith.constant 0 : index
      %200 = vector.load %arg9[%c2_151, %c2_152, %c0_153] : memref<10x10x128xf32, #tpu.memory_space<vmem>>, vector<8x8x128xf32>
      %201 = vector.broadcast %62 : vector<1x8x128xf32> to vector<8x8x128xf32>
      %202 = arith.mulf %200, %201 : vector<8x8x128xf32>
      %203 = arith.addf %199, %202 : vector<8x8x128xf32>
      %204 = vector.broadcast %110 : vector<1x8x128xf32> to vector<8x8x128xf32>
      %205 = arith.addf %203, %204 : vector<8x8x128xf32>
      %cst_154 = arith.constant 5.000000e-01 : f32
      %206 = vector.broadcast %cst_154 : f32 to vector<8x8x128xf32>
      %207 = arith.mulf %206, %205 : vector<8x8x128xf32>
      %208 = arith.mulf %205, %205 : vector<8x8x128xf32>
      %209 = arith.mulf %208, %205 : vector<8x8x128xf32>
      %cst_155 = arith.constant 4.471500e-02 : f32
      %210 = vector.broadcast %cst_155 : f32 to vector<8x8x128xf32>
      %211 = arith.mulf %210, %209 : vector<8x8x128xf32>
      %212 = arith.addf %205, %211 : vector<8x8x128xf32>
      %cst_156 = arith.constant 0.797884583 : f32
      %213 = vector.broadcast %cst_156 : f32 to vector<8x8x128xf32>
      %214 = arith.mulf %213, %212 : vector<8x8x128xf32>
      %215 = math.tanh %214 : vector<8x8x128xf32>
      %cst_157 = arith.constant 1.000000e+00 : f32
      %216 = vector.broadcast %cst_157 : f32 to vector<8x8x128xf32>
      %217 = arith.addf %216, %215 : vector<8x8x128xf32>
      %218 = arith.mulf %207, %217 : vector<8x8x128xf32>
      %219 = arith.index_cast %164 : i32 to index
      %c0_158 = arith.constant 0 : index
      %c0_159 = arith.constant 0 : index
      %c0_160 = arith.constant 0 : index
      %220 = vector.load %arg10[%219, %c0_158, %c0_159, %c0_160] : memref<8x8x8x128xf32, #tpu.memory_space<vmem>>, vector<1x8x8x128xf32>
      %221 = vector.shape_cast %220 : vector<1x8x8x128xf32> to vector<8x8x128xf32>
      %222 = vector.shape_cast %218 : vector<8x8x128xf32> to vector<1x8x8x128xf32>
      tpu.vector_store %arg10[%219, %c0_158, %c0_159, %c0_160], %222 {strides = array<i32>} : memref<8x8x8x128xf32, #tpu.memory_space<vmem>>, vector<1x8x8x128xf32>,
      %c0_161 = arith.constant 0 : index
      %c0_162 = arith.constant 0 : index
      %c0_163 = arith.constant 0 : index
      %223 = vector.load %arg11[%c0_161, %c0_162, %c0_163] : memref<1x1x128xf32, #tpu.memory_space<vmem>>, vector<1x1x128xf32>
      %cst_164 = arith.constant dense<0.000000e+00> : vector<128xf32>
      %224 = vector.multi_reduction <add>, %218, %cst_164 [0, 1] : vector<8x8x128xf32> to vector<128xf32>
      %225 = vector.shape_cast %224 : vector<128xf32> to vector<1x1x128xf32>
      %226 = arith.addf %223, %225 : vector<1x1x128xf32>
      %c0_165 = arith.constant 0 : index
      %c0_166 = arith.constant 0 : index
      %c0_167 = arith.constant 0 : index
      %227 = vector.load %arg11[%c0_165, %c0_166, %c0_167] : memref<1x1x128xf32, #tpu.memory_space<vmem>>, vector<1x1x128xf32>
      tpu.vector_store %arg11[%c0_165, %c0_166, %c0_167], %226 {strides = array<i32>} : memref<1x1x128xf32, #tpu.memory_space<vmem>>, vector<1x1x128xf32>,
      %c0_168 = arith.constant 0 : index
      %c0_169 = arith.constant 0 : index
      %c0_170 = arith.constant 0 : index
      %228 = vector.load %arg12[%c0_168, %c0_169, %c0_170] : memref<1x1x128xf32, #tpu.memory_space<vmem>>, vector<1x1x128xf32>
      %229 = arith.mulf %218, %218 : vector<8x8x128xf32>
      %cst_171 = arith.constant dense<0.000000e+00> : vector<128xf32>
      %230 = vector.multi_reduction <add>, %229, %cst_171 [0, 1] : vector<8x8x128xf32> to vector<128xf32>
      %231 = vector.shape_cast %230 : vector<128xf32> to vector<1x1x128xf32>
      %232 = arith.addf %228, %231 : vector<1x1x128xf32>
      %c0_172 = arith.constant 0 : index
      %c0_173 = arith.constant 0 : index
      %c0_174 = arith.constant 0 : index
      %233 = vector.load %arg12[%c0_172, %c0_173, %c0_174] : memref<1x1x128xf32, #tpu.memory_space<vmem>>, vector<1x1x128xf32>
      tpu.vector_store %arg12[%c0_172, %c0_173, %c0_174], %232 {strides = array<i32>} : memref<1x1x128xf32, #tpu.memory_space<vmem>>, vector<1x1x128xf32>,
    }
    %c8_i32_89 = arith.constant 8 : i32
    %c0_90 = arith.constant 0 : index
    %c0_91 = arith.constant 0 : index
    %c0_92 = arith.constant 0 : index
    %118 = vector.load %arg11[%c0_90, %c0_91, %c0_92] : memref<1x1x128xf32, #tpu.memory_space<vmem>>, vector<1x1x128xf32>
    %cst_93 = arith.constant 0.001953125 : f32
    %119 = vector.broadcast %cst_93 : f32 to vector<1x1x128xf32>
    %120 = arith.mulf %118, %119 : vector<1x1x128xf32>
    %c0_94 = arith.constant 0 : index
    %c0_95 = arith.constant 0 : index
    %c0_96 = arith.constant 0 : index
    %121 = vector.load %arg12[%c0_94, %c0_95, %c0_96] : memref<1x1x128xf32, #tpu.memory_space<vmem>>, vector<1x1x128xf32>
    %cst_97 = arith.constant 0.001953125 : f32
    %122 = vector.broadcast %cst_97 : f32 to vector<1x1x128xf32>
    %123 = arith.mulf %121, %122 : vector<1x1x128xf32>
    %124 = arith.mulf %120, %120 : vector<1x1x128xf32>
    %125 = arith.subf %123, %124 : vector<1x1x128xf32>
    %cst_98 = arith.constant 0.000000e+00 : f32
    %126 = vector.broadcast %cst_98 : f32 to vector<1x1x128xf32>
    %127 = arith.maximumf %125, %126 : vector<1x1x128xf32>
    %cst_99 = arith.constant 9.99999974E-6 : f32
    %128 = vector.broadcast %cst_99 : f32 to vector<1x1x128xf32>
    %129 = arith.addf %127, %128 : vector<1x1x128xf32>
    %130 = math.rsqrt %129 : vector<1x1x128xf32>
    %131 = arith.mulf %106, %130 : vector<1x1x128xf32>
    %132 = arith.mulf %120, %131 : vector<1x1x128xf32>
    %133 = arith.subf %108, %132 : vector<1x1x128xf32>
    %134 = arith.mulf %133, %100 : vector<1x1x128xf32>
    %135 = arith.addf %134, %104 : vector<1x1x128xf32>
    %136 = math.absf %131 : vector<1x1x128xf32>
    %cst_100 = arith.constant 1.000000e-30 : f32
    %137 = vector.broadcast %cst_100 : f32 to vector<1x1x128xf32>
    %138 = arith.cmpf ogt, %136, %137 : vector<1x1x128xf32>
    %cst_101 = arith.constant 0.000000e+00 : f32
    %139 = vector.broadcast %cst_101 : f32 to vector<1x1x128xf32>
    %140 = arith.subf %139, %133 : vector<1x1x128xf32>
    %cst_102 = arith.constant 1.000000e+00 : f32
    %141 = vector.broadcast %cst_102 : f32 to vector<1x1x128xf32>
    %142 = arith.select %138, %131, %141 : vector<1x1x128xi1>, vector<1x1x128xf32>
    %143 = arith.divf %140, %142 : vector<1x1x128xf32>
    %cst_103 = arith.constant 0.000000e+00 : f32
    %144 = vector.broadcast %cst_103 : f32 to vector<1x1x128xf32>
    %145 = arith.select %138, %143, %144 : vector<1x1x128xi1>, vector<1x1x128xf32>
    %146 = vector.shape_cast %145 : vector<1x1x128xf32> to vector<1x1x128xf32>
    %147 = vector.broadcast %146 : vector<1x1x128xf32> to vector<1x10x128xf32>
    %c0_104 = arith.constant 0 : index
    %c0_105 = arith.constant 0 : index
    %c0_106 = arith.constant 0 : index
    %148 = vector.load %arg9[%c0_104, %c0_105, %c0_106] : memref<10x10x128xf32, #tpu.memory_space<vmem>>, vector<1x10x128xf32>
    tpu.vector_store %arg9[%c0_104, %c0_105, %c0_106], %147 {strides = array<i32>} : memref<10x10x128xf32, #tpu.memory_space<vmem>>, vector<1x10x128xf32>,
    %149 = vector.shape_cast %145 : vector<1x1x128xf32> to vector<1x1x128xf32>
    %150 = vector.broadcast %149 : vector<1x1x128xf32> to vector<1x10x128xf32>
    %c9 = arith.constant 9 : index
    %c0_107 = arith.constant 0 : index
    %c0_108 = arith.constant 0 : index
    %151 = vector.load %arg9[%c9, %c0_107, %c0_108] : memref<10x10x128xf32, #tpu.memory_space<vmem>>, vector<1x10x128xf32>
    tpu.vector_store %arg9[%c9, %c0_107, %c0_108], %150 {strides = array<i32>} : memref<10x10x128xf32, #tpu.memory_space<vmem>>, vector<1x10x128xf32>,
    %152 = vector.shape_cast %145 : vector<1x1x128xf32> to vector<1x1x128xf32>
    %153 = vector.broadcast %152 : vector<1x1x128xf32> to vector<10x1x128xf32>
    %c0_109 = arith.constant 0 : index
    %c0_110 = arith.constant 0 : index
    %c0_111 = arith.constant 0 : index
    %154 = vector.load %arg9[%c0_109, %c0_110, %c0_111] : memref<10x10x128xf32, #tpu.memory_space<vmem>>, vector<10x1x128xf32>
    tpu.vector_store %arg9[%c0_109, %c0_110, %c0_111], %153 {strides = array<i32>} : memref<10x10x128xf32, #tpu.memory_space<vmem>>, vector<10x1x128xf32>,
    %155 = vector.shape_cast %145 : vector<1x1x128xf32> to vector<1x1x128xf32>
    %156 = vector.broadcast %155 : vector<1x1x128xf32> to vector<10x1x128xf32>
    %c0_112 = arith.constant 0 : index
    %c9_113 = arith.constant 9 : index
    %c0_114 = arith.constant 0 : index
    %157 = vector.load %arg9[%c0_112, %c9_113, %c0_114] : memref<10x10x128xf32, #tpu.memory_space<vmem>>, vector<10x1x128xf32>
    tpu.vector_store %arg9[%c0_112, %c9_113, %c0_114], %156 {strides = array<i32>} : memref<10x10x128xf32, #tpu.memory_space<vmem>>, vector<10x1x128xf32>,
    %158 = vector.shape_cast %131 : vector<1x1x128xf32> to vector<1x1x128xf32>
    %159 = vector.broadcast %158 : vector<1x1x128xf32> to vector<1x8x128xf32>
    %160 = vector.shape_cast %135 : vector<1x1x128xf32> to vector<1x1x128xf32>
    %161 = vector.broadcast %160 : vector<1x1x128xf32> to vector<1x8x128xf32>
    %c0_i32_115 = arith.constant 0 : i32
    %c8_i32_116 = arith.constant 8 : i32
    %162 = arith.addi %c0_i32_115, %c8_i32_116 : i32
    %c1_i32_117 = arith.constant 1 : i32
    scf.for %arg13 = %c0_i32_115 to %162 step %c1_i32_117  : i32 {
      %c1_i32_119 = arith.constant 1 : i32
      %163 = arith.muli %arg13, %c1_i32_119 : i32
      %c0_i32_120 = arith.constant 0 : i32
      %164 = arith.addi %c0_i32_120, %163 : i32
      %165 = arith.index_cast %164 : i32 to index
      %c0_121 = arith.constant 0 : index
      %c0_122 = arith.constant 0 : index
      %c0_123 = arith.constant 0 : index
      %166 = vector.load %arg10[%165, %c0_121, %c0_122, %c0_123] : memref<8x8x8x128xf32, #tpu.memory_space<vmem>>, vector<1x8x8x128xf32>
      %167 = vector.shape_cast %166 : vector<1x8x8x128xf32> to vector<8x8x128xf32>
      %c1_124 = arith.constant 1 : index
      %c1_125 = arith.constant 1 : index
      %c0_126 = arith.constant 0 : index
      %168 = vector.load %arg9[%c1_124, %c1_125, %c0_126] : memref<10x10x128xf32, #tpu.memory_space<vmem>>, vector<8x8x128xf32>
      tpu.vector_store %arg9[%c1_124, %c1_125, %c0_126], %167 {strides = array<i32>} : memref<10x10x128xf32, #tpu.memory_space<vmem>>, vector<8x8x128xf32>,
      %c0_127 = arith.constant 0 : index
      %c0_128 = arith.constant 0 : index
      %c0_129 = arith.constant 0 : index
      %169 = vector.load %arg9[%c0_127, %c0_128, %c0_129] : memref<10x10x128xf32, #tpu.memory_space<vmem>>, vector<8x8x128xf32>
      %170 = vector.broadcast %65 : vector<1x8x128xf32> to vector<8x8x128xf32>
      %171 = arith.mulf %169, %170 : vector<8x8x128xf32>
      %c0_130 = arith.constant 0 : index
      %c1_131 = arith.constant 1 : index
      %c0_132 = arith.constant 0 : index
      %172 = vector.load %arg9[%c0_130, %c1_131, %c0_132] : memref<10x10x128xf32, #tpu.memory_space<vmem>>, vector<8x8x128xf32>
      %173 = vector.broadcast %68 : vector<1x8x128xf32> to vector<8x8x128xf32>
      %174 = arith.mulf %172, %173 : vector<8x8x128xf32>
      %175 = arith.addf %171, %174 : vector<8x8x128xf32>
      %c0_133 = arith.constant 0 : index
      %c2_134 = arith.constant 2 : index
      %c0_135 = arith.constant 0 : index
      %176 = vector.load %arg9[%c0_133, %c2_134, %c0_135] : memref<10x10x128xf32, #tpu.memory_space<vmem>>, vector<8x8x128xf32>
      %177 = vector.broadcast %71 : vector<1x8x128xf32> to vector<8x8x128xf32>
      %178 = arith.mulf %176, %177 : vector<8x8x128xf32>
      %179 = arith.addf %175, %178 : vector<8x8x128xf32>
      %c1_136 = arith.constant 1 : index
      %c0_137 = arith.constant 0 : index
      %c0_138 = arith.constant 0 : index
      %180 = vector.load %arg9[%c1_136, %c0_137, %c0_138] : memref<10x10x128xf32, #tpu.memory_space<vmem>>, vector<8x8x128xf32>
      %181 = vector.broadcast %74 : vector<1x8x128xf32> to vector<8x8x128xf32>
      %182 = arith.mulf %180, %181 : vector<8x8x128xf32>
      %183 = arith.addf %179, %182 : vector<8x8x128xf32>
      %c1_139 = arith.constant 1 : index
      %c1_140 = arith.constant 1 : index
      %c0_141 = arith.constant 0 : index
      %184 = vector.load %arg9[%c1_139, %c1_140, %c0_141] : memref<10x10x128xf32, #tpu.memory_space<vmem>>, vector<8x8x128xf32>
      %185 = vector.broadcast %77 : vector<1x8x128xf32> to vector<8x8x128xf32>
      %186 = arith.mulf %184, %185 : vector<8x8x128xf32>
      %187 = arith.addf %183, %186 : vector<8x8x128xf32>
      %c1_142 = arith.constant 1 : index
      %c2_143 = arith.constant 2 : index
      %c0_144 = arith.constant 0 : index
      %188 = vector.load %arg9[%c1_142, %c2_143, %c0_144] : memref<10x10x128xf32, #tpu.memory_space<vmem>>, vector<8x8x128xf32>
      %189 = vector.broadcast %80 : vector<1x8x128xf32> to vector<8x8x128xf32>
      %190 = arith.mulf %188, %189 : vector<8x8x128xf32>
      %191 = arith.addf %187, %190 : vector<8x8x128xf32>
      %c2_145 = arith.constant 2 : index
      %c0_146 = arith.constant 0 : index
      %c0_147 = arith.constant 0 : index
      %192 = vector.load %arg9[%c2_145, %c0_146, %c0_147] : memref<10x10x128xf32, #tpu.memory_space<vmem>>, vector<8x8x128xf32>
      %193 = vector.broadcast %83 : vector<1x8x128xf32> to vector<8x8x128xf32>
      %194 = arith.mulf %192, %193 : vector<8x8x128xf32>
      %195 = arith.addf %191, %194 : vector<8x8x128xf32>
      %c2_148 = arith.constant 2 : index
      %c1_149 = arith.constant 1 : index
      %c0_150 = arith.constant 0 : index
      %196 = vector.load %arg9[%c2_148, %c1_149, %c0_150] : memref<10x10x128xf32, #tpu.memory_space<vmem>>, vector<8x8x128xf32>
      %197 = vector.broadcast %86 : vector<1x8x128xf32> to vector<8x8x128xf32>
      %198 = arith.mulf %196, %197 : vector<8x8x128xf32>
      %199 = arith.addf %195, %198 : vector<8x8x128xf32>
      %c2_151 = arith.constant 2 : index
      %c2_152 = arith.constant 2 : index
      %c0_153 = arith.constant 0 : index
      %200 = vector.load %arg9[%c2_151, %c2_152, %c0_153] : memref<10x10x128xf32, #tpu.memory_space<vmem>>, vector<8x8x128xf32>
      %201 = vector.broadcast %89 : vector<1x8x128xf32> to vector<8x8x128xf32>
      %202 = arith.mulf %200, %201 : vector<8x8x128xf32>
      %203 = arith.addf %199, %202 : vector<8x8x128xf32>
      %204 = vector.broadcast %159 : vector<1x8x128xf32> to vector<8x8x128xf32>
      %205 = arith.mulf %203, %204 : vector<8x8x128xf32>
      %206 = vector.broadcast %161 : vector<1x8x128xf32> to vector<8x8x128xf32>
      %207 = arith.addf %205, %206 : vector<8x8x128xf32>
      %208 = arith.index_cast %164 : i32 to index
      %c0_154 = arith.constant 0 : index
      %c0_155 = arith.constant 0 : index
      %c0_156 = arith.constant 0 : index
      %209 = vector.load %arg8[%208, %c0_154, %c0_155, %c0_156] : memref<8x8x8x128xf32, #tpu.memory_space<vmem>>, vector<1x8x8x128xf32>
      %210 = vector.shape_cast %209 : vector<1x8x8x128xf32> to vector<8x8x128xf32>
      %211 = vector.shape_cast %207 : vector<8x8x128xf32> to vector<1x8x8x128xf32>
      tpu.vector_store %arg8[%208, %c0_154, %c0_155, %c0_156], %211 {strides = array<i32>} : memref<8x8x8x128xf32, #tpu.memory_space<vmem>>, vector<1x8x8x128xf32>,
    }
    %c8_i32_118 = arith.constant 8 : i32
    return
  }
  func.func @transform_0(%arg0: i32) -> (i32, i32, i32, i32) {
    %c0_i32 = arith.constant 0 : i32
    %c0_i32_0 = arith.constant 0 : i32
    %c0_i32_1 = arith.constant 0 : i32
    %c0_i32_2 = arith.constant 0 : i32
    return %c0_i32, %c0_i32_0, %c0_i32_1, %arg0 : i32, i32, i32, i32
  }
  func.func @transform_1(%arg0: i32) -> (i32, i32, i32, i32) {
    %c0_i32 = arith.constant 0 : i32
    %c0_i32_0 = arith.constant 0 : i32
    %c0_i32_1 = arith.constant 0 : i32
    %c0_i32_2 = arith.constant 0 : i32
    return %c0_i32, %c0_i32_0, %c0_i32_1, %arg0 : i32, i32, i32, i32
  }
  func.func @transform_2(%arg0: i32) -> (i32, i32) {
    %c0_i32 = arith.constant 0 : i32
    %c0_i32_0 = arith.constant 0 : i32
    return %c0_i32, %arg0 : i32, i32
  }
  func.func @transform_3(%arg0: i32) -> (i32, i32, i32, i32) {
    %c0_i32 = arith.constant 0 : i32
    %c0_i32_0 = arith.constant 0 : i32
    %c0_i32_1 = arith.constant 0 : i32
    %c0_i32_2 = arith.constant 0 : i32
    return %c0_i32, %c0_i32_0, %c0_i32_1, %arg0 : i32, i32, i32, i32
  }
  func.func @transform_4(%arg0: i32) -> (i32, i32) {
    %c0_i32 = arith.constant 0 : i32
    %c0_i32_0 = arith.constant 0 : i32
    return %c0_i32, %arg0 : i32, i32
  }
  func.func @transform_5(%arg0: i32) -> (i32, i32) {
    %c0_i32 = arith.constant 0 : i32
    %c0_i32_0 = arith.constant 0 : i32
    return %c0_i32, %arg0 : i32, i32
  }
  func.func @transform_6(%arg0: i32) -> (i32, i32) {
    %c0_i32 = arith.constant 0 : i32
    %c0_i32_0 = arith.constant 0 : i32
    return %c0_i32, %arg0 : i32, i32
  }
  func.func @transform_7(%arg0: i32) -> (i32, i32, i32, i32) {
    %c0_i32 = arith.constant 0 : i32
    %c0_i32_0 = arith.constant 0 : i32
    %c0_i32_1 = arith.constant 0 : i32
    %c0_i32_2 = arith.constant 0 : i32
    return %c0_i32, %c0_i32_0, %c0_i32_1, %arg0 : i32, i32, i32, i32
  }
}

</mosaic_0001>

<llo_original>
// kernel: tpu_custom_call.1
$region0: #{tpu_custom_call.1}
  #allocation0 [shape = 'u32[]', space=smem, size = 0x4, offset = 0x4, fixed_abs, tag = 'smem constant byte address 0x4 - core index']
  #allocation1 [shape = 'u32[144,128]{1,0:T(1,128)}', space=vmem, size = 0x12000, scoped, tag = 'internal scratch']
  #allocation2 [shape = 'f32[10,10,128]{2,1,0:T(8,128)}', space=vmem, size = 0x14000, scoped, tag = 'scratch operand']
  #allocation3 [shape = 'f32[8,8,8,128]{3,2,1,0:T(8,128)}', space=vmem, size = 0x40000, scoped, tag = 'scratch operand']
  #allocation4 [shape = 'f32[1,1,128]{2,1,0:T(1,128)}', space=vmem, size = 0x200, scoped, tag = 'scratch operand']
  #allocation5 [shape = 'f32[1,1,128]{2,1,0:T(1,128)}', space=vmem, size = 0x200, scoped, tag = 'scratch operand']
  %s0 = inlined_call_operand.hbm [shape: f32[8,8,8,256], index: 0, kind: input, shape index: {}]
  %s1 = inlined_call_operand.hbm [shape: f32[3,3,1,256], index: 1, kind: input, shape index: {}]
  %s2 = inlined_call_operand.vmem [shape: f32[1,256], index: 2, kind: input, shape index: {}]
  %s3 = inlined_call_operand.hbm [shape: f32[3,3,1,256], index: 3, kind: input, shape index: {}]
  %s4 = inlined_call_operand.vmem [shape: f32[1,256], index: 4, kind: input, shape index: {}]
  %s5 = inlined_call_operand.vmem [shape: f32[1,256], index: 5, kind: input, shape index: {}]
  %s6 = inlined_call_operand.vmem [shape: f32[1,256], index: 6, kind: input, shape index: {}]
  %s7 = inlined_call_operand.hbm [shape: f32[8,8,8,256], index: 7, kind: output, shape index: {}]
  %s8 = sld [smem:[#allocation0]]
  $region87: #{tpu_custom_call.1} parent=0
    _
  %s10 = ssub.s32 1, %s8
  %s11 = scalar_select 0, %s10, %s8
  $region1: #{tpu_custom_call.1} parent=0
    #allocation6 [shape = 'u8[524288]{0}', space=vmem, size = 0x80000, scoped, tag = 'input window, operand 0']
    #allocation7 [shape = 's32[2]{0}', space=sflag, size = 0x8, scoped, tag = 'scoped memory for tpu_custom_call.1']
    #allocation8 [shape = 's32[2]{0}', space=sflag, size = 0x8, scoped, tag = 'scoped memory for tpu_custom_call.1']
    #allocation9 [shape = 'u8[9216]{0}', space=vmem, size = 0x2400, scoped, tag = 'input window, operand 1']
    #allocation10 [shape = 's32[2]{0}', space=sflag, size = 0x8, scoped, tag = 'scoped memory for tpu_custom_call.1']
    #allocation11 [shape = 'u8[9216]{0}', space=vmem, size = 0x2400, scoped, tag = 'input window, operand 3']
    #allocation12 [shape = 'u8[524288]{0}', space=vmem, size = 0x80000, scoped, tag = 'output window, operand 0']
    %12 = vsyncpa [#allocation7], 0
    %s13 = scalar_lea.sflag [#allocation7], 1
    %14 = vsyncpa %s13, 0
    %15 = vsyncpa [#allocation10], 0
    %s16 = scalar_lea.sflag [#allocation10], 1
    %17 = vsyncpa %s16, 0
    %18 = vsyncpa [#allocation8], 0
    %s19 = scalar_lea.sflag [#allocation8], 1
    %20 = vsyncpa %s19, 0
    loop: start=0, step=1, limit=4
    $region2: #{tpu_custom_call.1} parent=1 // loop_pre_header
      _
    $region3: #{tpu_custom_call.1} parent=1 // loop_header
      %s22 = sphi 0, %s26
      %p23 = scmp.ge.s32.totalorder %s22, 4
      %s32 = sphi 0, %s34
      %s35 = sphi 0, %s32
      %s36 = sphi 0, %s35
      %s52 = sphi 0, %s36
      %s58 = sphi 0, %s60
      %s61 = sphi 0, %s58
      %s62 = sphi 0, %s61
      %s78 = sphi 0, %s62
      %s84 = sphi 0, %s86
      %s87 = sphi 0, %s84
      %s88 = sphi 0, %s87
      %s104 = sphi 0, %s88
      %s110 = sphi 0, %s112
      %s113 = sphi 0, %s110
      %s114 = sphi 0, %s113
      %s130 = sphi 0, %s114
      %s136 = sphi 0, %s138
      %s139 = sphi 0, %s136
      %s140 = sphi 0, %s139
      %s156 = sphi 0, %s140
      %s162 = sphi 0, %s164
      %s165 = sphi 0, %s162
      %s166 = sphi 0, %s165
      %s182 = sphi 0, %s166
      %s188 = sphi 0, %s190
      %s191 = sphi 0, %s188
      %s192 = sphi 0, %s191
      %s208 = sphi 0, %s192
      %s214 = sphi 0, %s216
      %s217 = sphi 0, %s214
      %s218 = sphi 0, %s217
      %s234 = sphi 0, %s218
    $region4: #{tpu_custom_call.1} parent=1 // loop_header_branch
      %25 = sbr.rel (%p23) target = $region8
    $region5: #{tpu_custom_call.1} parent=1 // loop_body
      %s27 = ssub.s32 %s22, 1
      %s28 = ssub.s32 %s22, 2
      %s29 = sadd.s32 %s22, 1
      %s30 = ssub.s32 %s22, %s29
      %p31 = scmp.eq.s32.totalorder %s30, 0
      %s33 = sadd.s32 %s32, 1
      %s34 = scalar_select %p31, %s32, %s33
      %p37 = pneg %p31
      %p38 = scmp.eq.s32.totalorder %s22, 1
      %p39 = por %p37, %p38
      %p40 = scmp.ne.s32.totalorder %s32, %s35
      %p41 = scmp.eq.s32.totalorder %s22, 0
      %p42 = por %p40, %p41
      %p43 = scmp.ne.s32.totalorder %s32, %s35
      %p44 = scmp.eq.s32.totalorder %s27, 1
      %p45 = por %p43, %p44
      %p46 = scmp.ne.s32.totalorder %s35, %s36
      %p47 = scmp.eq.s32.totalorder %s27, 0
      %p48 = por %p46, %p47
      %p49 = scmp.ne.s32.totalorder %s35, %s36
      %p50 = scmp.eq.s32.totalorder %s28, 1
      %p51 = por %p49, %p50
      %p53 = scmp.ne.s32.totalorder %s36, %s52
      %p54 = scmp.eq.s32.totalorder %s28, 0
      %p55 = por %p53, %p54
      %s56 = ssub.s32 %s22, %s29
      %p57 = scmp.eq.s32.totalorder %s56, 0
      %s59 = sadd.s32 %s58, 1
      %s60 = scalar_select %p57, %s58, %s59
      %p63 = pneg %p57
      %p64 = scmp.eq.s32.totalorder %s22, 1
      %p65 = por %p63, %p64
      %p66 = scmp.ne.s32.totalorder %s58, %s61
      %p67 = scmp.eq.s32.totalorder %s22, 0
      %p68 = por %p66, %p67
      %p69 = scmp.ne.s32.totalorder %s58, %s61
      %p70 = scmp.eq.s32.totalorder %s27, 1
      %p71 = por %p69, %p70
      %p72 = scmp.ne.s32.totalorder %s61, %s62
      %p73 = scmp.eq.s32.totalorder %s27, 0
      %p74 = por %p72, %p73
      %p75 = scmp.ne.s32.totalorder %s61, %s62
      %p76 = scmp.eq.s32.totalorder %s28, 1
      %p77 = por %p75, %p76
      %p79 = scmp.ne.s32.totalorder %s62, %s78
      %p80 = scmp.eq.s32.totalorder %s28, 0
      %p81 = por %p79, %p80
      %s82 = ssub.s32 %s22, %s29
      %p83 = scmp.eq.s32.totalorder %s82, 0
      %s85 = sadd.s32 %s84, 1
      %s86 = scalar_select %p83, %s84, %s85
      %p89 = pneg %p83
      %p90 = scmp.eq.s32.totalorder %s22, 1
      %p91 = por %p89, %p90
      %p92 = scmp.ne.s32.totalorder %s84, %s87
      %p93 = scmp.eq.s32.totalorder %s22, 0
      %p94 = por %p92, %p93
      %p95 = scmp.ne.s32.totalorder %s84, %s87
      %p96 = scmp.eq.s32.totalorder %s27, 1
      %p97 = por %p95, %p96
      %p98 = scmp.ne.s32.totalorder %s87, %s88
      %p99 = scmp.eq.s32.totalorder %s27, 0
      %p100 = por %p98, %p99
      %p101 = scmp.ne.s32.totalorder %s87, %s88
      %p102 = scmp.eq.s32.totalorder %s28, 1
      %p103 = por %p101, %p102
      %p105 = scmp.ne.s32.totalorder %s88, %s104
      %p106 = scmp.eq.s32.totalorder %s28, 0
      %p107 = por %p105, %p106
      %s108 = ssub.s32 %s22, %s29
      %p109 = scmp.eq.s32.totalorder %s108, 0
      %s111 = sadd.s32 %s110, 1
      %s112 = scalar_select %p109, %s110, %s111
      %p115 = pneg %p109
      %p116 = scmp.eq.s32.totalorder %s22, 1
      %p117 = por %p115, %p116
      %p118 = scmp.ne.s32.totalorder %s110, %s113
      %p119 = scmp.eq.s32.totalorder %s22, 0
      %p120 = por %p118, %p119
      %p121 = scmp.ne.s32.totalorder %s110, %s113
      %p122 = scmp.eq.s32.totalorder %s27, 1
      %p123 = por %p121, %p122
      %p124 = scmp.ne.s32.totalorder %s113, %s114
      %p125 = scmp.eq.s32.totalorder %s27, 0
      %p126 = por %p124, %p125
      %p127 = scmp.ne.s32.totalorder %s113, %s114
      %p128 = scmp.eq.s32.totalorder %s28, 1
      %p129 = por %p127, %p128
      %p131 = scmp.ne.s32.totalorder %s114, %s130
      %p132 = scmp.eq.s32.totalorder %s28, 0
      %p133 = por %p131, %p132
      %s134 = ssub.s32 %s22, %s29
      %p135 = scmp.eq.s32.totalorder %s134, 0
      %s137 = sadd.s32 %s136, 1
      %s138 = scalar_select %p135, %s136, %s137
      %p141 = pneg %p135
      %p142 = scmp.eq.s32.totalorder %s22, 1
      %p143 = por %p141, %p142
      %p144 = scmp.ne.s32.totalorder %s136, %s139
      %p145 = scmp.eq.s32.totalorder %s22, 0
      %p146 = por %p144, %p145
      %p147 = scmp.ne.s32.totalorder %s136, %s139
      %p148 = scmp.eq.s32.totalorder %s27, 1
      %p149 = por %p147, %p148
      %p150 = scmp.ne.s32.totalorder %s139, %s140
      %p151 = scmp.eq.s32.totalorder %s27, 0
      %p152 = por %p150, %p151
      %p153 = scmp.ne.s32.totalorder %s139, %s140
      %p154 = scmp.eq.s32.totalorder %s28, 1
      %p155 = por %p153, %p154
      %p157 = scmp.ne.s32.totalorder %s140, %s156
      %p158 = scmp.eq.s32.totalorder %s28, 0
      %p159 = por %p157, %p158
      %s160 = ssub.s32 %s22, %s29
      %p161 = scmp.eq.s32.totalorder %s160, 0
      %s163 = sadd.s32 %s162, 1
      %s164 = scalar_select %p161, %s162, %s163
      %p167 = pneg %p161
      %p168 = scmp.eq.s32.totalorder %s22, 1
      %p169 = por %p167, %p168
      %p170 = scmp.ne.s32.totalorder %s162, %s165
      %p171 = scmp.eq.s32.totalorder %s22, 0
      %p172 = por %p170, %p171
      %p173 = scmp.ne.s32.totalorder %s162, %s165
      %p174 = scmp.eq.s32.totalorder %s27, 1
      %p175 = por %p173, %p174
      %p176 = scmp.ne.s32.totalorder %s165, %s166
      %p177 = scmp.eq.s32.totalorder %s27, 0
      %p178 = por %p176, %p177
      %p179 = scmp.ne.s32.totalorder %s165, %s166
      %p180 = scmp.eq.s32.totalorder %s28, 1
      %p181 = por %p179, %p180
      %p183 = scmp.ne.s32.totalorder %s166, %s182
      %p184 = scmp.eq.s32.totalorder %s28, 0
      %p185 = por %p183, %p184
      %s186 = ssub.s32 %s22, %s29
      %p187 = scmp.eq.s32.totalorder %s186, 0
      %s189 = sadd.s32 %s188, 1
      %s190 = scalar_select %p187, %s188, %s189
      %p193 = pneg %p187
      %p194 = scmp.eq.s32.totalorder %s22, 1
      %p195 = por %p193, %p194
      %p196 = scmp.ne.s32.totalorder %s188, %s191
      %p197 = scmp.eq.s32.totalorder %s22, 0
      %p198 = por %p196, %p197
      %p199 = scmp.ne.s32.totalorder %s188, %s191
      %p200 = scmp.eq.s32.totalorder %s27, 1
      %p201 = por %p199, %p200
      %p202 = scmp.ne.s32.totalorder %s191, %s192
      %p203 = scmp.eq.s32.totalorder %s27, 0
      %p204 = por %p202, %p203
      %p205 = scmp.ne.s32.totalorder %s191, %s192
      %p206 = scmp.eq.s32.totalorder %s28, 1
      %p207 = por %p205, %p206
      %p209 = scmp.ne.s32.totalorder %s192, %s208
      %p210 = scmp.eq.s32.totalorder %s28, 0
      %p211 = por %p209, %p210
      %s212 = ssub.s32 %s22, %s29
      %p213 = scmp.eq.s32.totalorder %s212, 0
      %s215 = sadd.s32 %s214, 1
      %s216 = scalar_select %p213, %s214, %s215
      %p219 = pneg %p213
      %p220 = scmp.eq.s32.totalorder %s22, 1
      %p221 = por %p219, %p220
      %p222 = scmp.ne.s32.totalorder %s214, %s217
      %p223 = scmp.eq.s32.totalorder %s22, 0
      %p224 = por %p222, %p223
      %p225 = scmp.ne.s32.totalorder %s214, %s217
      %p226 = scmp.eq.s32.totalorder %s27, 1
      %p227 = por %p225, %p226
      %p228 = scmp.ne.s32.totalorder %s217, %s218
      %p229 = scmp.eq.s32.totalorder %s27, 0
      %p230 = por %p228, %p229
      %p231 = scmp.ne.s32.totalorder %s217, %s218
      %p232 = scmp.eq.s32.totalorder %s28, 1
      %p233 = por %p231, %p232
      %p235 = scmp.ne.s32.totalorder %s218, %s234
      %p236 = scmp.eq.s32.totalorder %s28, 0
      %p237 = por %p235, %p236
      %p238 = scmp.le.s32.totalorder 1, %s22
      %p239 = scmp.lt.s32.totalorder %s22, 3
      %p240 = pnand %p238, %p239
      %p241 = pneg %p240
      // Predicated region
      $region9: #{tpu_custom_call.1} parent=5 // pred_check
        _
      $region10: #{tpu_custom_call.1} parent=5 // pred_check_branch
        %243 = sbr.rel (%p240) target = $region12
      $region11: #{tpu_custom_call.1} parent=5 // pred_region
        %s244 = ssub.s32 %s22, 1
      $region12: #{tpu_custom_call.1} parent=5 // pred_fallthru
        _
      %p245 = scmp.lt.s32.totalorder %s22, 2
      // Predicated region
      $region13: #{tpu_custom_call.1} parent=5 // pred_check
        %p246 = pneg %p245
      $region14: #{tpu_custom_call.1} parent=5 // pred_check_branch
        %248 = sbr.rel (%p246) target = $region16
      $region15: #{tpu_custom_call.1} parent=5 // pred_region
        // Predicated region
        $region17: #{tpu_custom_call.1} parent=15 // pred_check
          %p249 = pneg %p42
        $region18: #{tpu_custom_call.1} parent=15 // pred_check_branch
          %251 = sbr.rel (%p249) target = $region20
        $region19: #{tpu_custom_call.1} parent=15 // pred_region
          %s252 = sand.u32 %s32, 1
          %s253 = scalar_lea.sflag [#allocation7], %s252
          %s254 = sand.u32 %s32, 1
          %s255 = smul.addr %s254, 512
          %s256 = scalar_lea.vmem [#allocation6], %s255
          %s258 = ssub.s32 8192, 8192
          %259 = vsyncadd %s253, %s258
          %s260 = smul.addr %s22, 128
          %s261 = scalar_lea.hbm %s0, %s260
          %s262 = sshll.u32 %s256, 4
          %s263 = int_to_ptr.vmem [resolvable:$true] %s262
          %268 = dma.hbm_to_vmem [thread:$0]  %s261, 8192, %s263, %s253, 256, 128, 8
        $region20: #{tpu_custom_call.1} parent=15 // pred_fallthru
          _
        // Predicated region
        $region21: #{tpu_custom_call.1} parent=15 // pred_check
          %p269 = pneg %p68
        $region22: #{tpu_custom_call.1} parent=15 // pred_check_branch
          %271 = sbr.rel (%p269) target = $region24
        $region23: #{tpu_custom_call.1} parent=15 // pred_region
          %s272 = sand.u32 %s22, 1
          %s273 = scalar_lea.sflag [#allocation10], %s272
          %s274 = sand.u32 %s58, 1
          %s275 = smul.addr %s274, 9
          %s276 = scalar_lea.vmem [#allocation9], %s275
          %s278 = ssub.s32 144, 144
          %279 = vsyncadd %s273, %s278
          %s280 = smul.addr %s22, 16
          %s281 = scalar_lea.hbm %s1, %s280
          %s282 = sshll.u32 %s276, 4
          %s283 = int_to_ptr.vmem [resolvable:$true] %s282
          %288 = dma.hbm_to_vmem [thread:$0]  %s281, 144, %s283, %s273, 32, 16, 1
        $region24: #{tpu_custom_call.1} parent=15 // pred_fallthru
          _
        // Predicated region
        $region25: #{tpu_custom_call.1} parent=15 // pred_check
          %p289 = pneg %p94
        $region26: #{tpu_custom_call.1} parent=15 // pred_check_branch
          %291 = sbr.rel (%p289) target = $region28
        $region27: #{tpu_custom_call.1} parent=15 // pred_region
          %p292 = scmp.lt.s32.totalorder %s22, 1
          %s293 = scalar_select %p292, %s22, 1
          %s294 = scalar_lea.vmem %s2, %s293
        $region28: #{tpu_custom_call.1} parent=15 // pred_fallthru
          _
        // Predicated region
        $region29: #{tpu_custom_call.1} parent=15 // pred_check
          %p295 = pneg %p120
        $region30: #{tpu_custom_call.1} parent=15 // pred_check_branch
          %297 = sbr.rel (%p295) target = $region32
        $region31: #{tpu_custom_call.1} parent=15 // pred_region
          %s298 = sand.u32 %s22, 1
          %s299 = scalar_lea.sflag [#allocation10], %s298
          %s300 = sand.u32 %s110, 1
          %s301 = smul.addr %s300, 9
          %s302 = scalar_lea.vmem [#allocation11], %s301
          %s304 = ssub.s32 144, 144
          %305 = vsyncadd %s299, %s304
          %s306 = smul.addr %s22, 16
          %s307 = scalar_lea.hbm %s3, %s306
          %s308 = sshll.u32 %s302, 4
          %s309 = int_to_ptr.vmem [resolvable:$true] %s308
          %314 = dma.hbm_to_vmem [thread:$0]  %s307, 144, %s309, %s299, 32, 16, 1
        $region32: #{tpu_custom_call.1} parent=15 // pred_fallthru
          _
        // Predicated region
        $region33: #{tpu_custom_call.1} parent=15 // pred_check
          %p315 = pneg %p146
        $region34: #{tpu_custom_call.1} parent=15 // pred_check_branch
          %317 = sbr.rel (%p315) target = $region36
        $region35: #{tpu_custom_call.1} parent=15 // pred_region
          %p318 = scmp.lt.s32.totalorder %s22, 1
          %s319 = scalar_select %p318, %s22, 1
          %s320 = scalar_lea.vmem %s4, %s319
        $region36: #{tpu_custom_call.1} parent=15 // pred_fallthru
          _
        // Predicated region
        $region37: #{tpu_custom_call.1} parent=15 // pred_check
          %p321 = pneg %p172
        $region38: #{tpu_custom_call.1} parent=15 // pred_check_branch
          %323 = sbr.rel (%p321) target = $region40
        $region39: #{tpu_custom_call.1} parent=15 // pred_region
          %p324 = scmp.lt.s32.totalorder %s22, 1
          %s325 = scalar_select %p324, %s22, 1
          %s326 = scalar_lea.vmem %s5, %s325
        $region40: #{tpu_custom_call.1} parent=15 // pred_fallthru
          _
        // Predicated region
        $region41: #{tpu_custom_call.1} parent=15 // pred_check
          %p327 = pneg %p198
        $region42: #{tpu_custom_call.1} parent=15 // pred_check_branch
          %329 = sbr.rel (%p327) target = $region44
        $region43: #{tpu_custom_call.1} parent=15 // pred_region
          %p330 = scmp.lt.s32.totalorder %s22, 1
          %s331 = scalar_select %p330, %s22, 1
          %s332 = scalar_lea.vmem %s6, %s331
        $region44: #{tpu_custom_call.1} parent=15 // pred_fallthru
          _
      $region16: #{tpu_custom_call.1} parent=5 // pred_fallthru
        _
      %p333 = scmp.le.s32.totalorder 1, %s22
      %p334 = scmp.lt.s32.totalorder %s22, 3
      %p335 = pnand %p333, %p334
      %p336 = pneg %p335
      // Predicated region
      $region45: #{tpu_custom_call.1} parent=5 // pred_check
        _
      $region46: #{tpu_custom_call.1} parent=5 // pred_check_branch
        %338 = sbr.rel (%p335) target = $region48
      $region47: #{tpu_custom_call.1} parent=5 // pred_region
        %s339 = ssub.s32 %s22, 1
        %s340 = sand.u32 %s35, 1
        %s341 = scalar_lea.sflag [#allocation7], %s340
        %s342 = sand.u32 %s35, 1
        %s343 = smul.addr %s342, 512
        %s344 = scalar_lea.vmem [#allocation6], %s343
        // Predicated region
        $region49: #{tpu_custom_call.1} parent=47 // pred_check
          %p345 = pneg %p48
        $region50: #{tpu_custom_call.1} parent=47 // pred_check_branch
          %347 = sbr.rel (%p345) target = $region52
        $region51: #{tpu_custom_call.1} parent=47 // pred_region
          %348 = dma.done %s341, 8192
        $region52: #{tpu_custom_call.1} parent=47 // pred_fallthru
          _
        %s349 = sand.u32 %s27, 1
        %s350 = scalar_lea.sflag [#allocation10], %s349
        %s351 = sand.u32 %s61, 1
        %s352 = smul.addr %s351, 9
        %s353 = scalar_lea.vmem [#allocation9], %s352
        // Predicated region
        $region53: #{tpu_custom_call.1} parent=47 // pred_check
          %p354 = pneg %p74
        $region54: #{tpu_custom_call.1} parent=47 // pred_check_branch
          %356 = sbr.rel (%p354) target = $region56
        $region55: #{tpu_custom_call.1} parent=47 // pred_region
          %357 = dma.done %s350, 144
        $region56: #{tpu_custom_call.1} parent=47 // pred_fallthru
          _
        %s358 = sand.u32 %s27, 1
        %s359 = scalar_lea.sflag [#allocation10], %s358
        %s360 = sand.u32 %s113, 1
        %s361 = smul.addr %s360, 9
        %s362 = scalar_lea.vmem [#allocation11], %s361
        // Predicated region
        $region57: #{tpu_custom_call.1} parent=47 // pred_check
          %p363 = pneg %p126
        $region58: #{tpu_custom_call.1} parent=47 // pred_check_branch
          %365 = sbr.rel (%p363) target = $region60
        $region59: #{tpu_custom_call.1} parent=47 // pred_region
          %366 = dma.done %s359, 144
        $region60: #{tpu_custom_call.1} parent=47 // pred_fallthru
          _
        %s367 = sand.u32 %s35, 1
        %s368 = scalar_lea.sflag [#allocation7], %s367
        %s369 = sand.u32 %s35, 1
        %s370 = smul.addr %s369, 512
        %s371 = scalar_lea.vmem [#allocation6], %s370
        %p372 = pneg %p48
        %p373 = pneg %p45
        %s374 = sand.u32 %s27, 1
        %s375 = scalar_lea.sflag [#allocation10], %s374
        %s376 = sand.u32 %s61, 1
        %s377 = smul.addr %s376, 9
        %s378 = scalar_lea.vmem [#allocation9], %s377
        %p379 = pneg %p74
        %p380 = pneg %p71
        %p381 = scmp.lt.s32.totalorder %s27, 1
        %s382 = scalar_select %p381, %s27, 1
        %s383 = scalar_lea.vmem %s2, %s382
        %p384 = pneg %p100
        %p385 = pneg %p97
        %s386 = sand.u32 %s27, 1
        %s387 = scalar_lea.sflag [#allocation10], %s386
        %s388 = sand.u32 %s113, 1
        %s389 = smul.addr %s388, 9
        %s390 = scalar_lea.vmem [#allocation11], %s389
        %p391 = pneg %p126
        %p392 = pneg %p123
        %p393 = scmp.lt.s32.totalorder %s27, 1
        %s394 = scalar_select %p393, %s27, 1
        %s395 = scalar_lea.vmem %s4, %s394
        %p396 = pneg %p152
        %p397 = pneg %p149
        %p398 = scmp.lt.s32.totalorder %s27, 1
        %s399 = scalar_select %p398, %s27, 1
        %s400 = scalar_lea.vmem %s5, %s399
        %p401 = pneg %p178
        %p402 = pneg %p175
        %p403 = scmp.lt.s32.totalorder %s27, 1
        %s404 = scalar_select %p403, %s27, 1
        %s405 = scalar_lea.vmem %s6, %s404
        %p406 = pneg %p204
        %p407 = pneg %p201
        %p408 = pneg %p230
        %p409 = pneg %p227
        %s410 = sand.u32 %s217, 1
        %s411 = scalar_lea.sflag [#allocation8], %s410
        %s412 = sand.u32 %s217, 1
        %s413 = smul.addr %s412, 512
        %s414 = scalar_lea.vmem [#allocation12], %s413
        %p415 = scmp.lt.s32.totalorder %s27, 1
        %s416 = scalar_select %p415, %s27, 1
        %s417 = scalar_lea.vmem %s2, %s416
        %p418 = scmp.lt.s32.totalorder %s27, 1
        %s419 = scalar_select %p418, %s27, 1
        %s420 = scalar_lea.vmem %s4, %s419
        %p421 = scmp.lt.s32.totalorder %s27, 1
        %s422 = scalar_select %p421, %s27, 1
        %s423 = scalar_lea.vmem %s5, %s422
        %p424 = scmp.lt.s32.totalorder %s27, 1
        %s425 = scalar_select %p424, %s27, 1
        %s426 = scalar_lea.vmem %s6, %s425
        %v427 = vld [vmem:[%s353] sm:$0x1]
        %s428 = scalar_lea.vmem %s353, 1 [#allocation9]
        %v429 = vld [vmem:[%s428] sm:$0x1]
        %s430 = scalar_lea.vmem %s353, 2 [#allocation9]
        %v431 = vld [vmem:[%s430] sm:$0x1]
        %s432 = scalar_lea.vmem %s353, 3 [#allocation9]
        %v433 = vld [vmem:[%s432] sm:$0x1]
        %s434 = scalar_lea.vmem %s353, 4 [#allocation9]
        %v435 = vld [vmem:[%s434] sm:$0x1]
        %s436 = scalar_lea.vmem %s353, 5 [#allocation9]
        %v437 = vld [vmem:[%s436] sm:$0x1]
        %s438 = scalar_lea.vmem %s353, 6 [#allocation9]
        %v439 = vld [vmem:[%s438] sm:$0x1]
        %s440 = scalar_lea.vmem %s353, 7 [#allocation9]
        %v441 = vld [vmem:[%s440] sm:$0x1]
        %s442 = scalar_lea.vmem %s353, 8 [#allocation9]
        %v443 = vld [vmem:[%s442] sm:$0x1]
        %v444 = vld [vmem:[%s362] sm:$0x1]
        %s445 = scalar_lea.vmem %s362, 1 [#allocation11]
        %v446 = vld [vmem:[%s445] sm:$0x1]
        %s447 = scalar_lea.vmem %s362, 2 [#allocation11]
        %v448 = vld [vmem:[%s447] sm:$0x1]
        %s449 = scalar_lea.vmem %s362, 3 [#allocation11]
        %v450 = vld [vmem:[%s449] sm:$0x1]
        %s451 = scalar_lea.vmem %s362, 4 [#allocation11]
        %v452 = vld [vmem:[%s451] sm:$0x1]
        %s453 = scalar_lea.vmem %s362, 5 [#allocation11]
        %v454 = vld [vmem:[%s453] sm:$0x1]
        %s455 = scalar_lea.vmem %s362, 6 [#allocation11]
        %v456 = vld [vmem:[%s455] sm:$0x1]
        %s457 = scalar_lea.vmem %s362, 7 [#allocation11]
        %v458 = vld [vmem:[%s457] sm:$0x1]
        %s459 = scalar_lea.vmem %s362, 8 [#allocation11]
        %v460 = vld [vmem:[%s459] sm:$0x1]
        %v461 = vadd.f32 %v444, 0.0
        %v462 = vadd.f32 %v461, %v446
        %v463 = vadd.f32 %v462, %v448
        %v464 = vadd.f32 %v463, %v450
        %v465 = vadd.f32 %v464, %v452
        %v466 = vadd.f32 %v465, %v454
        %v467 = vadd.f32 %v466, %v456
        %v468 = vadd.f32 %v467, %v458
        %v469 = vadd.f32 %v468, %v460
        %v470 = vld [vmem:[%s417] sm:$0x1]
        %v471 = vld [vmem:[%s420] sm:$0x1]
        %v472 = vld [vmem:[%s423] sm:$0x1]
        %v473 = vld [vmem:[%s426] sm:$0x1]
        %474 = vst [vmem:[#allocation2] sm:$0xff] 0.0
        %475 = vst [vmem:[#allocation2 + $0x8] sm:$0x3] 0.0
        %476 = vst [vmem:[#allocation2 + $0x10] sm:$0xff] 0.0
        %477 = vst [vmem:[#allocation2 + $0x18] sm:$0x3] 0.0
        %478 = vst [vmem:[#allocation2 + $0x20] sm:$0xff] 0.0
        %479 = vst [vmem:[#allocation2 + $0x28] sm:$0x3] 0.0
        %480 = vst [vmem:[#allocation2 + $0x30] sm:$0xff] 0.0
        %481 = vst [vmem:[#allocation2 + $0x38] sm:$0x3] 0.0
        %482 = vst [vmem:[#allocation2 + $0x40] sm:$0xff] 0.0
        %483 = vst [vmem:[#allocation2 + $0x48] sm:$0x3] 0.0
        %484 = vst [vmem:[#allocation2 + $0x50] sm:$0xff] 0.0
        %485 = vst [vmem:[#allocation2 + $0x58] sm:$0x3] 0.0
        %486 = vst [vmem:[#allocation2 + $0x60] sm:$0xff] 0.0
        %487 = vst [vmem:[#allocation2 + $0x68] sm:$0x3] 0.0
        %488 = vst [vmem:[#allocation2 + $0x70] sm:$0xff] 0.0
        %489 = vst [vmem:[#allocation2 + $0x78] sm:$0x3] 0.0
        %490 = vst [vmem:[#allocation2 + $0x80] sm:$0xff] 0.0
        %491 = vst [vmem:[#allocation2 + $0x88] sm:$0x3] 0.0
        %492 = vst [vmem:[#allocation2 + $0x90] sm:$0xff] 0.0
        %493 = vst [vmem:[#allocation2 + $0x98] sm:$0x3] 0.0
        %494 = vst [vmem:[#allocation4] sm:$0x1] 0.0
        %495 = vst [vmem:[#allocation5] sm:$0x1] 0.0
        loop: start=0, step=1, limit=8
        $region61: #{tpu_custom_call.1} parent=47 // loop_pre_header
          _
        $region62: #{tpu_custom_call.1} parent=47 // loop_header
          %s497 = sphi 0, %s501
          %p498 = scmp.ge.s32.totalorder %s497, 8
        $region63: #{tpu_custom_call.1} parent=47 // loop_header_branch
          %500 = sbr.rel (%p498) target = $region67
        $region64: #{tpu_custom_call.1} parent=47 // loop_body
          %s502 = smul.u32 %s497, 64
          %s503 = scalar_lea.vmem %s344, %s502 [#allocation6]
          %v504 = vld [vmem:[%s503] sm:$0xff]
          %v505 = vld [vmem:[%s503 + $0x8] sm:$0xff]
          %v506 = vld [vmem:[%s503 + $0x10] sm:$0xff]
          %v507 = vld [vmem:[%s503 + $0x18] sm:$0xff]
          %v508 = vld [vmem:[%s503 + $0x20] sm:$0xff]
          %v509 = vld [vmem:[%s503 + $0x28] sm:$0xff]
          %v510 = vld [vmem:[%s503 + $0x30] sm:$0xff]
          %v511 = vld [vmem:[%s503 + $0x38] sm:$0xff]
          %s512 = scalar_lea.vmem [#allocation2], 16
          %513 = vst [vmem:[%s512 + $0x1] sm:$0xff] %v504
          %514 = vst [vmem:[%s512 + $0x11] sm:$0xff] %v505
          %515 = vst [vmem:[%s512 + $0x21] sm:$0xff] %v506
          %516 = vst [vmem:[%s512 + $0x31] sm:$0xff] %v507
          %517 = vst [vmem:[%s512 + $0x41] sm:$0xff] %v508
          %518 = vst [vmem:[%s512 + $0x51] sm:$0xff] %v509
          %519 = vst [vmem:[%s512 + $0x61] sm:$0xff] %v510
          %520 = vst [vmem:[%s512 + $0x71] sm:$0xff] %v511
          %v521 = vld [vmem:[#allocation2] sm:$0xff]
          %v522 = vld [vmem:[#allocation2 + $0x10] sm:$0xff]
          %v523 = vld [vmem:[#allocation2 + $0x20] sm:$0xff]
          %v524 = vld [vmem:[#allocation2 + $0x30] sm:$0xff]
          %v525 = vld [vmem:[#allocation2 + $0x40] sm:$0xff]
          %v526 = vld [vmem:[#allocation2 + $0x50] sm:$0xff]
          %v527 = vld [vmem:[#allocation2 + $0x60] sm:$0xff]
          %v528 = vld [vmem:[#allocation2 + $0x70] sm:$0xff]
          %v530 = vlaneseq
          %v531 = vshrl.u32 %v530, 7
          %v532 = vsub.s32 0, %v531
          %v533 = vrot.slane %v427, %v532
          %v535 = vmul.f32 %v521, %v533
          %v536 = vmul.f32 %v522, %v533
          %v537 = vmul.f32 %v523, %v533
          %v538 = vmul.f32 %v524, %v533
          %v539 = vmul.f32 %v525, %v533
          %v540 = vmul.f32 %v526, %v533
          %v541 = vmul.f32 %v527, %v533
          %v542 = vmul.f32 %v528, %v533
          %v543 = vld [vmem:[#allocation2 + $0x1] sm:$0xff]
          %v544 = vld [vmem:[#allocation2 + $0x11] sm:$0xff]
          %v545 = vld [vmem:[#allocation2 + $0x21] sm:$0xff]
          %v546 = vld [vmem:[#allocation2 + $0x31] sm:$0xff]
          %v547 = vld [vmem:[#allocation2 + $0x41] sm:$0xff]
          %v548 = vld [vmem:[#allocation2 + $0x51] sm:$0xff]
          %v549 = vld [vmem:[#allocation2 + $0x61] sm:$0xff]
          %v550 = vld [vmem:[#allocation2 + $0x71] sm:$0xff]
          %v552 = vlaneseq
          %v553 = vshrl.u32 %v552, 7
          %v554 = vsub.s32 0, %v553
          %v555 = vrot.slane %v429, %v554
          %v557 = vmul.f32 %v543, %v555
          %v558 = vmul.f32 %v544, %v555
          %v559 = vmul.f32 %v545, %v555
          %v560 = vmul.f32 %v546, %v555
          %v561 = vmul.f32 %v547, %v555
          %v562 = vmul.f32 %v548, %v555
          %v563 = vmul.f32 %v549, %v555
          %v564 = vmul.f32 %v550, %v555
          %v565 = vadd.f32 %v535, %v557
          %v566 = vadd.f32 %v536, %v558
          %v567 = vadd.f32 %v537, %v559
          %v568 = vadd.f32 %v538, %v560
          %v569 = vadd.f32 %v539, %v561
          %v570 = vadd.f32 %v540, %v562
          %v571 = vadd.f32 %v541, %v563
          %v572 = vadd.f32 %v542, %v564
          %v573 = vld [vmem:[#allocation2 + $0x2] sm:$0xff]
          %v574 = vld [vmem:[#allocation2 + $0x12] sm:$0xff]
          %v575 = vld [vmem:[#allocation2 + $0x22] sm:$0xff]
          %v576 = vld [vmem:[#allocation2 + $0x32] sm:$0xff]
          %v577 = vld [vmem:[#allocation2 + $0x42] sm:$0xff]
          %v578 = vld [vmem:[#allocation2 + $0x52] sm:$0xff]
          %v579 = vld [vmem:[#allocation2 + $0x62] sm:$0xff]
          %v580 = vld [vmem:[#allocation2 + $0x72] sm:$0xff]
          %v582 = vlaneseq
          %v583 = vshrl.u32 %v582, 7
          %v584 = vsub.s32 0, %v583
          %v585 = vrot.slane %v431, %v584
          %v587 = vmul.f32 %v573, %v585
          %v588 = vmul.f32 %v574, %v585
          %v589 = vmul.f32 %v575, %v585
          %v590 = vmul.f32 %v576, %v585
          %v591 = vmul.f32 %v577, %v585
          %v592 = vmul.f32 %v578, %v585
          %v593 = vmul.f32 %v579, %v585
          %v594 = vmul.f32 %v580, %v585
          %v595 = vadd.f32 %v565, %v587
          %v596 = vadd.f32 %v566, %v588
          %v597 = vadd.f32 %v567, %v589
          %v598 = vadd.f32 %v568, %v590
          %v599 = vadd.f32 %v569, %v591
          %v600 = vadd.f32 %v570, %v592
          %v601 = vadd.f32 %v571, %v593
          %v602 = vadd.f32 %v572, %v594
          %v603 = vld [vmem:[%s512] sm:$0xff]
          %v604 = vld [vmem:[%s512 + $0x10] sm:$0xff]
          %v605 = vld [vmem:[%s512 + $0x20] sm:$0xff]
          %v606 = vld [vmem:[%s512 + $0x30] sm:$0xff]
          %v607 = vld [vmem:[%s512 + $0x40] sm:$0xff]
          %v608 = vld [vmem:[%s512 + $0x50] sm:$0xff]
          %v609 = vld [vmem:[%s512 + $0x60] sm:$0xff]
          %v610 = vld [vmem:[%s512 + $0x70] sm:$0xff]
          %v612 = vlaneseq
          %v613 = vshrl.u32 %v612, 7
          %v614 = vsub.s32 0, %v613
          %v615 = vrot.slane %v433, %v614
          %v617 = vmul.f32 %v603, %v615
          %v618 = vmul.f32 %v604, %v615
          %v619 = vmul.f32 %v605, %v615
          %v620 = vmul.f32 %v606, %v615
          %v621 = vmul.f32 %v607, %v615
          %v622 = vmul.f32 %v608, %v615
          %v623 = vmul.f32 %v609, %v615
          %v624 = vmul.f32 %v610, %v615
          %v625 = vadd.f32 %v595, %v617
          %v626 = vadd.f32 %v596, %v618
          %v627 = vadd.f32 %v597, %v619
          %v628 = vadd.f32 %v598, %v620
          %v629 = vadd.f32 %v599, %v621
          %v630 = vadd.f32 %v600, %v622
          %v631 = vadd.f32 %v601, %v623
          %v632 = vadd.f32 %v602, %v624
          %v633 = vld [vmem:[%s512 + $0x1] sm:$0xff]
          %v634 = vld [vmem:[%s512 + $0x11] sm:$0xff]
          %v635 = vld [vmem:[%s512 + $0x21] sm:$0xff]
          %v636 = vld [vmem:[%s512 + $0x31] sm:$0xff]
          %v637 = vld [vmem:[%s512 + $0x41] sm:$0xff]
          %v638 = vld [vmem:[%s512 + $0x51] sm:$0xff]
          %v639 = vld [vmem:[%s512 + $0x61] sm:$0xff]
          %v640 = vld [vmem:[%s512 + $0x71] sm:$0xff]
          %v642 = vlaneseq
          %v643 = vshrl.u32 %v642, 7
          %v644 = vsub.s32 0, %v643
          %v645 = vrot.slane %v435, %v644
          %v647 = vmul.f32 %v633, %v645
          %v648 = vmul.f32 %v634, %v645
          %v649 = vmul.f32 %v635, %v645
          %v650 = vmul.f32 %v636, %v645
          %v651 = vmul.f32 %v637, %v645
          %v652 = vmul.f32 %v638, %v645
          %v653 = vmul.f32 %v639, %v645
          %v654 = vmul.f32 %v640, %v645
          %v655 = vadd.f32 %v625, %v647
          %v656 = vadd.f32 %v626, %v648
          %v657 = vadd.f32 %v627, %v649
          %v658 = vadd.f32 %v628, %v650
          %v659 = vadd.f32 %v629, %v651
          %v660 = vadd.f32 %v630, %v652
          %v661 = vadd.f32 %v631, %v653
          %v662 = vadd.f32 %v632, %v654
          %v663 = vld [vmem:[%s512 + $0x2] sm:$0xff]
          %v664 = vld [vmem:[%s512 + $0x12] sm:$0xff]
          %v665 = vld [vmem:[%s512 + $0x22] sm:$0xff]
          %v666 = vld [vmem:[%s512 + $0x32] sm:$0xff]
          %v667 = vld [vmem:[%s512 + $0x42] sm:$0xff]
          %v668 = vld [vmem:[%s512 + $0x52] sm:$0xff]
          %v669 = vld [vmem:[%s512 + $0x62] sm:$0xff]
          %v670 = vld [vmem:[%s512 + $0x72] sm:$0xff]
          %v672 = vlaneseq
          %v673 = vshrl.u32 %v672, 7
          %v674 = vsub.s32 0, %v673
          %v675 = vrot.slane %v437, %v674
          %v677 = vmul.f32 %v663, %v675
          %v678 = vmul.f32 %v664, %v675
          %v679 = vmul.f32 %v665, %v675
          %v680 = vmul.f32 %v666, %v675
          %v681 = vmul.f32 %v667, %v675
          %v682 = vmul.f32 %v668, %v675
          %v683 = vmul.f32 %v669, %v675
          %v684 = vmul.f32 %v670, %v675
          %v685 = vadd.f32 %v655, %v677
          %v686 = vadd.f32 %v656, %v678
          %v687 = vadd.f32 %v657, %v679
          %v688 = vadd.f32 %v658, %v680
          %v689 = vadd.f32 %v659, %v681
          %v690 = vadd.f32 %v660, %v682
          %v691 = vadd.f32 %v661, %v683
          %v692 = vadd.f32 %v662, %v684
          %s693 = scalar_lea.vmem [#allocation2], 32
          %v694 = vld [vmem:[%s693] sm:$0xff]
          %v695 = vld [vmem:[%s693 + $0x10] sm:$0xff]
          %v696 = vld [vmem:[%s693 + $0x20] sm:$0xff]
          %v697 = vld [vmem:[%s693 + $0x30] sm:$0xff]
          %v698 = vld [vmem:[%s693 + $0x40] sm:$0xff]
          %v699 = vld [vmem:[%s693 + $0x50] sm:$0xff]
          %v700 = vld [vmem:[%s693 + $0x60] sm:$0xff]
          %v701 = vld [vmem:[%s693 + $0x70] sm:$0xff]
          %v703 = vlaneseq
          %v704 = vshrl.u32 %v703, 7
          %v705 = vsub.s32 0, %v704
          %v706 = vrot.slane %v439, %v705
          %v708 = vmul.f32 %v694, %v706
          %v709 = vmul.f32 %v695, %v706
          %v710 = vmul.f32 %v696, %v706
          %v711 = vmul.f32 %v697, %v706
          %v712 = vmul.f32 %v698, %v706
          %v713 = vmul.f32 %v699, %v706
          %v714 = vmul.f32 %v700, %v706
          %v715 = vmul.f32 %v701, %v706
          %v716 = vadd.f32 %v685, %v708
          %v717 = vadd.f32 %v686, %v709
          %v718 = vadd.f32 %v687, %v710
          %v719 = vadd.f32 %v688, %v711
          %v720 = vadd.f32 %v689, %v712
          %v721 = vadd.f32 %v690, %v713
          %v722 = vadd.f32 %v691, %v714
          %v723 = vadd.f32 %v692, %v715
          %v724 = vld [vmem:[%s693 + $0x1] sm:$0xff]
          %v725 = vld [vmem:[%s693 + $0x11] sm:$0xff]
          %v726 = vld [vmem:[%s693 + $0x21] sm:$0xff]
          %v727 = vld [vmem:[%s693 + $0x31] sm:$0xff]
          %v728 = vld [vmem:[%s693 + $0x41] sm:$0xff]
          %v729 = vld [vmem:[%s693 + $0x51] sm:$0xff]
          %v730 = vld [vmem:[%s693 + $0x61] sm:$0xff]
          %v731 = vld [vmem:[%s693 + $0x71] sm:$0xff]
          %v733 = vlaneseq
          %v734 = vshrl.u32 %v733, 7
          %v735 = vsub.s32 0, %v734
          %v736 = vrot.slane %v441, %v735
          %v738 = vmul.f32 %v724, %v736
          %v739 = vmul.f32 %v725, %v736
          %v740 = vmul.f32 %v726, %v736
          %v741 = vmul.f32 %v727, %v736
          %v742 = vmul.f32 %v728, %v736
          %v743 = vmul.f32 %v729, %v736
          %v744 = vmul.f32 %v730, %v736
          %v745 = vmul.f32 %v731, %v736
          %v746 = vadd.f32 %v716, %v738
          %v747 = vadd.f32 %v717, %v739
          %v748 = vadd.f32 %v718, %v740
          %v749 = vadd.f32 %v719, %v741
          %v750 = vadd.f32 %v720, %v742
          %v751 = vadd.f32 %v721, %v743
          %v752 = vadd.f32 %v722, %v744
          %v753 = vadd.f32 %v723, %v745
          %v754 = vld [vmem:[%s693 + $0x2] sm:$0xff]
          %v755 = vld [vmem:[%s693 + $0x12] sm:$0xff]
          %v756 = vld [vmem:[%s693 + $0x22] sm:$0xff]
          %v757 = vld [vmem:[%s693 + $0x32] sm:$0xff]
          %v758 = vld [vmem:[%s693 + $0x42] sm:$0xff]
          %v759 = vld [vmem:[%s693 + $0x52] sm:$0xff]
          %v760 = vld [vmem:[%s693 + $0x62] sm:$0xff]
          %v761 = vld [vmem:[%s693 + $0x72] sm:$0xff]
          %v763 = vlaneseq
          %v764 = vshrl.u32 %v763, 7
          %v765 = vsub.s32 0, %v764
          %v766 = vrot.slane %v443, %v765
          %v768 = vmul.f32 %v754, %v766
          %v769 = vmul.f32 %v755, %v766
          %v770 = vmul.f32 %v756, %v766
          %v771 = vmul.f32 %v757, %v766
          %v772 = vmul.f32 %v758, %v766
          %v773 = vmul.f32 %v759, %v766
          %v774 = vmul.f32 %v760, %v766
          %v775 = vmul.f32 %v761, %v766
          %v776 = vadd.f32 %v746, %v768
          %v777 = vadd.f32 %v747, %v769
          %v778 = vadd.f32 %v748, %v770
          %v779 = vadd.f32 %v749, %v771
          %v780 = vadd.f32 %v750, %v772
          %v781 = vadd.f32 %v751, %v773
          %v782 = vadd.f32 %v752, %v774
          %v783 = vadd.f32 %v753, %v775
          %v785 = vlaneseq
          %v786 = vshrl.u32 %v785, 7
          %v787 = vsub.s32 0, %v786
          %v788 = vrot.slane %v470, %v787
          %v790 = vadd.f32 %v776, %v788
          %v791 = vadd.f32 %v777, %v788
          %v792 = vadd.f32 %v778, %v788
          %v793 = vadd.f32 %v779, %v788
          %v794 = vadd.f32 %v780, %v788
          %v795 = vadd.f32 %v781, %v788
          %v796 = vadd.f32 %v782, %v788
          %v797 = vadd.f32 %v783, %v788
          %v798 = vmul.f32 %v790, 0.5
          %v799 = vmul.f32 %v791, 0.5
          %v800 = vmul.f32 %v792, 0.5
          %v801 = vmul.f32 %v793, 0.5
          %v802 = vmul.f32 %v794, 0.5
          %v803 = vmul.f32 %v795, 0.5
          %v804 = vmul.f32 %v796, 0.5
          %v805 = vmul.f32 %v797, 0.5
          %v806 = vmul.f32 %v790, %v790
          %v807 = vmul.f32 %v791, %v791
          %v808 = vmul.f32 %v792, %v792
          %v809 = vmul.f32 %v793, %v793
          %v810 = vmul.f32 %v794, %v794
          %v811 = vmul.f32 %v795, %v795
          %v812 = vmul.f32 %v796, %v796
          %v813 = vmul.f32 %v797, %v797
          %v814 = vmul.f32 %v806, %v790
          %v815 = vmul.f32 %v807, %v791
          %v816 = vmul.f32 %v808, %v792
          %v817 = vmul.f32 %v809, %v793
          %v818 = vmul.f32 %v810, %v794
          %v819 = vmul.f32 %v811, %v795
          %v820 = vmul.f32 %v812, %v796
          %v821 = vmul.f32 %v813, %v797
          %v822 = vmul.f32 %v814, 0.044715
          %v823 = vmul.f32 %v815, 0.044715
          %v824 = vmul.f32 %v816, 0.044715
          %v825 = vmul.f32 %v817, 0.044715
          %v826 = vmul.f32 %v818, 0.044715
          %v827 = vmul.f32 %v819, 0.044715
          %v828 = vmul.f32 %v820, 0.044715
          %v829 = vmul.f32 %v821, 0.044715
          %v830 = vadd.f32 %v790, %v822
          %v831 = vadd.f32 %v791, %v823
          %v832 = vadd.f32 %v792, %v824
          %v833 = vadd.f32 %v793, %v825
          %v834 = vadd.f32 %v794, %v826
          %v835 = vadd.f32 %v795, %v827
          %v836 = vadd.f32 %v796, %v828
          %v837 = vadd.f32 %v797, %v829
          %v838 = vmul.f32 %v830, 0.7978846
          %v839 = vmul.f32 %v831, 0.7978846
          %v840 = vmul.f32 %v832, 0.7978846
          %v841 = vmul.f32 %v833, 0.7978846
          %v842 = vmul.f32 %v834, 0.7978846
          %v843 = vmul.f32 %v835, 0.7978846
          %v844 = vmul.f32 %v836, 0.7978846
          %v845 = vmul.f32 %v837, 0.7978846
          %v846 = vtanh.pop %v838
          %v847 = vtanh.pop %v839
          %v848 = vtanh.pop %v840
          %v849 = vtanh.pop %v841
          %v850 = vtanh.pop %v842
          %v851 = vtanh.pop %v843
          %v852 = vtanh.pop %v844
          %v853 = vtanh.pop %v845
          %v854 = vadd.f32 %v846, 1.0
          %v855 = vadd.f32 %v847, 1.0
          %v856 = vadd.f32 %v848, 1.0
          %v857 = vadd.f32 %v849, 1.0
          %v858 = vadd.f32 %v850, 1.0
          %v859 = vadd.f32 %v851, 1.0
          %v860 = vadd.f32 %v852, 1.0
          %v861 = vadd.f32 %v853, 1.0
          %v862 = vmul.f32 %v798, %v854
          %v863 = vmul.f32 %v799, %v855
          %v864 = vmul.f32 %v800, %v856
          %v865 = vmul.f32 %v801, %v857
          %v866 = vmul.f32 %v802, %v858
          %v867 = vmul.f32 %v803, %v859
          %v868 = vmul.f32 %v804, %v860
          %v869 = vmul.f32 %v805, %v861
          %s870 = scalar_lea.vmem [#allocation3], %s502
          %871 = vst [vmem:[%s870] sm:$0xff] %v862
          %872 = vst [vmem:[%s870 + $0x8] sm:$0xff] %v863
          %873 = vst [vmem:[%s870 + $0x10] sm:$0xff] %v864
          %874 = vst [vmem:[%s870 + $0x18] sm:$0xff] %v865
          %875 = vst [vmem:[%s870 + $0x20] sm:$0xff] %v866
          %876 = vst [vmem:[%s870 + $0x28] sm:$0xff] %v867
          %877 = vst [vmem:[%s870 + $0x30] sm:$0xff] %v868
          %878 = vst [vmem:[%s870 + $0x38] sm:$0xff] %v869
          %v879 = vld [vmem:[#allocation4] sm:$0x1]
          %v880 = vadd.f32 %v862, %v863
          %v881 = vadd.f32 %v880, %v864
          %v882 = vadd.f32 %v881, %v865
          %v883 = vadd.f32 %v882, %v866
          %v884 = vadd.f32 %v883, %v867
          %v885 = vadd.f32 %v884, %v868
          %v886 = vadd.f32 %v885, %v869
          %v887 = vrot.slane %v886, 4
          %v888 = vadd.f32 %v886, %v887
          %v889 = vrot.slane %v888, 2
          %v890 = vadd.f32 %v888, %v889
          %v891 = vrot.slane %v890, 1
          %v892 = vadd.f32 %v890, %v891
          %v893 = vadd.f32 %v879, %v892
          %894 = vst [vmem:[#allocation4] sm:$0x1] %v893
          %v895 = vld [vmem:[#allocation5] sm:$0x1]
          %v896 = vmul.f32 %v862, %v862
          %v897 = vmul.f32 %v863, %v863
          %v898 = vmul.f32 %v864, %v864
          %v899 = vmul.f32 %v865, %v865
          %v900 = vmul.f32 %v866, %v866
          %v901 = vmul.f32 %v867, %v867
          %v902 = vmul.f32 %v868, %v868
          %v903 = vmul.f32 %v869, %v869
          %v904 = vadd.f32 %v896, %v897
          %v905 = vadd.f32 %v904, %v898
          %v906 = vadd.f32 %v905, %v899
          %v907 = vadd.f32 %v906, %v900
          %v908 = vadd.f32 %v907, %v901
          %v909 = vadd.f32 %v908, %v902
          %v910 = vadd.f32 %v909, %v903
          %v911 = vrot.slane %v910, 4
          %v912 = vadd.f32 %v910, %v911
          %v913 = vrot.slane %v912, 2
          %v914 = vadd.f32 %v912, %v913
          %v915 = vrot.slane %v914, 1
          %v916 = vadd.f32 %v914, %v915
          %v917 = vadd.f32 %v895, %v916
          %918 = vst [vmem:[#allocation5] sm:$0x1] %v917
        $region65: #{tpu_custom_call.1} parent=47 // loop_footer
          %s501 = sadd.s32 1, %s497
        $region66: #{tpu_custom_call.1} parent=47 // loop_footer_branch
          %496 = sbr.rel target = $region62
        $region67: #{tpu_custom_call.1} parent=47 // loop_exit
          _
        %v919 = vld [vmem:[#allocation4] sm:$0x1]
        %v920 = vmul.f32 %v919, 0.001953125
        %v921 = vld [vmem:[#allocation5] sm:$0x1]
        %v922 = vmul.f32 %v921, 0.001953125
        %v923 = vmul.f32 %v920, %v920
        %v924 = vsub.f32 %v922, %v923
        %v925 = vmax.f32 %v924, 0.0
        %v926 = vadd.f32 %v925, 1e-05
        %v927 = vrsqrt.pop %v926
        %v928 = vmul.f32 %v472, %v927
        %v929 = vmul.f32 %v920, %v928
        %v930 = vsub.f32 %v473, %v929
        %v931 = vmul.f32 %v930, %v469
        %v932 = vadd.f32 %v931, %v471
        %v933 = vand.u32 2147483647, %v928
        %vm934 = vcmp.gt.f32.partialorder %v933, 1e-30
        %v935 = vsub.f32 0.0, %v930
        %v936 = vsel %vm934, %v928, 1.0
        %v937 = vrcp.pop %v936
        %v938 = vmul.f32 %v935, %v937
        %v939 = vsel %vm934, %v938, 0.0
        %v941 = vlaneseq
        %v942 = vshrl.u32 %v941, 7
        %v943 = vsub.s32 0, %v942
        %v944 = vrot.slane %v939, %v943
        %946 = vst [vmem:[#allocation2] sm:$0xff] %v944
        %947 = vst [vmem:[#allocation2 + $0x8] sm:$0x3] %v944
        %s948 = scalar_lea.vmem [#allocation2], 144
        %949 = vst [vmem:[%s948] sm:$0xff] %v944
        %950 = vst [vmem:[%s948 + $0x8] sm:$0x3] %v944
        %951 = vst [vmem:[#allocation2] sm:$0x1] %v939
        %952 = vst [vmem:[#allocation2 + $0x10] sm:$0x1] %v939
        %953 = vst [vmem:[#allocation2 + $0x20] sm:$0x1] %v939
        %954 = vst [vmem:[#allocation2 + $0x30] sm:$0x1] %v939
        %955 = vst [vmem:[#allocation2 + $0x40] sm:$0x1] %v939
        %956 = vst [vmem:[#allocation2 + $0x50] sm:$0x1] %v939
        %957 = vst [vmem:[#allocation2 + $0x60] sm:$0x1] %v939
        %958 = vst [vmem:[#allocation2 + $0x70] sm:$0x1] %v939
        %959 = vst [vmem:[#allocation2 + $0x80] sm:$0x1] %v939
        %960 = vst [vmem:[#allocation2 + $0x90] sm:$0x1] %v939
        %961 = vst [vmem:[#allocation2 + $0x9] sm:$0x1] %v939
        %962 = vst [vmem:[#allocation2 + $0x19] sm:$0x1] %v939
        %963 = vst [vmem:[#allocation2 + $0x29] sm:$0x1] %v939
        %964 = vst [vmem:[#allocation2 + $0x39] sm:$0x1] %v939
        %965 = vst [vmem:[#allocation2 + $0x49] sm:$0x1] %v939
        %966 = vst [vmem:[#allocation2 + $0x59] sm:$0x1] %v939
        %967 = vst [vmem:[#allocation2 + $0x69] sm:$0x1] %v939
        %968 = vst [vmem:[#allocation2 + $0x79] sm:$0x1] %v939
        %969 = vst [vmem:[#allocation2 + $0x89] sm:$0x1] %v939
        %970 = vst [vmem:[#allocation2 + $0x99] sm:$0x1] %v939
        loop: start=0, step=1, limit=8
        $region68: #{tpu_custom_call.1} parent=47 // loop_pre_header
          _
        $region69: #{tpu_custom_call.1} parent=47 // loop_header
          %s972 = sphi 0, %s976
          %p973 = scmp.ge.s32.totalorder %s972, 8
        $region70: #{tpu_custom_call.1} parent=47 // loop_header_branch
          %975 = sbr.rel (%p973) target = $region74
        $region71: #{tpu_custom_call.1} parent=47 // loop_body
          %s977 = smul.u32 %s972, 64
          %s978 = scalar_lea.vmem [#allocation3], %s977
          %v979 = vld [vmem:[%s978] sm:$0xff]
          %v980 = vld [vmem:[%s978 + $0x8] sm:$0xff]
          %v981 = vld [vmem:[%s978 + $0x10] sm:$0xff]
          %v982 = vld [vmem:[%s978 + $0x18] sm:$0xff]
          %v983 = vld [vmem:[%s978 + $0x20] sm:$0xff]
          %v984 = vld [vmem:[%s978 + $0x28] sm:$0xff]
          %v985 = vld [vmem:[%s978 + $0x30] sm:$0xff]
          %v986 = vld [vmem:[%s978 + $0x38] sm:$0xff]
          %s987 = scalar_lea.vmem [#allocation2], 16
          %988 = vst [vmem:[%s987 + $0x1] sm:$0xff] %v979
          %989 = vst [vmem:[%s987 + $0x11] sm:$0xff] %v980
          %990 = vst [vmem:[%s987 + $0x21] sm:$0xff] %v981
          %991 = vst [vmem:[%s987 + $0x31] sm:$0xff] %v982
          %992 = vst [vmem:[%s987 + $0x41] sm:$0xff] %v983
          %993 = vst [vmem:[%s987 + $0x51] sm:$0xff] %v984
          %994 = vst [vmem:[%s987 + $0x61] sm:$0xff] %v985
          %995 = vst [vmem:[%s987 + $0x71] sm:$0xff] %v986
          %v996 = vld [vmem:[#allocation2] sm:$0xff]
          %v997 = vld [vmem:[#allocation2 + $0x10] sm:$0xff]
          %v998 = vld [vmem:[#allocation2 + $0x20] sm:$0xff]
          %v999 = vld [vmem:[#allocation2 + $0x30] sm:$0xff]
          %v1000 = vld [vmem:[#allocation2 + $0x40] sm:$0xff]
          %v1001 = vld [vmem:[#allocation2 + $0x50] sm:$0xff]
          %v1002 = vld [vmem:[#allocation2 + $0x60] sm:$0xff]
          %v1003 = vld [vmem:[#allocation2 + $0x70] sm:$0xff]
          %v1005 = vlaneseq
          %v1006 = vshrl.u32 %v1005, 7
          %v1007 = vsub.s32 0, %v1006
          %v1008 = vrot.slane %v444, %v1007
          %v1010 = vmul.f32 %v996, %v1008
          %v1011 = vmul.f32 %v997, %v1008
          %v1012 = vmul.f32 %v998, %v1008
          %v1013 = vmul.f32 %v999, %v1008
          %v1014 = vmul.f32 %v1000, %v1008
          %v1015 = vmul.f32 %v1001, %v1008
          %v1016 = vmul.f32 %v1002, %v1008
          %v1017 = vmul.f32 %v1003, %v1008
          %v1018 = vld [vmem:[#allocation2 + $0x1] sm:$0xff]
          %v1019 = vld [vmem:[#allocation2 + $0x11] sm:$0xff]
          %v1020 = vld [vmem:[#allocation2 + $0x21] sm:$0xff]
          %v1021 = vld [vmem:[#allocation2 + $0x31] sm:$0xff]
          %v1022 = vld [vmem:[#allocation2 + $0x41] sm:$0xff]
          %v1023 = vld [vmem:[#allocation2 + $0x51] sm:$0xff]
          %v1024 = vld [vmem:[#allocation2 + $0x61] sm:$0xff]
          %v1025 = vld [vmem:[#allocation2 + $0x71] sm:$0xff]
          %v1027 = vlaneseq
          %v1028 = vshrl.u32 %v1027, 7
          %v1029 = vsub.s32 0, %v1028
          %v1030 = vrot.slane %v446, %v1029
          %v1032 = vmul.f32 %v1018, %v1030
          %v1033 = vmul.f32 %v1019, %v1030
          %v1034 = vmul.f32 %v1020, %v1030
          %v1035 = vmul.f32 %v1021, %v1030
          %v1036 = vmul.f32 %v1022, %v1030
          %v1037 = vmul.f32 %v1023, %v1030
          %v1038 = vmul.f32 %v1024, %v1030
          %v1039 = vmul.f32 %v1025, %v1030
          %v1040 = vadd.f32 %v1010, %v1032
          %v1041 = vadd.f32 %v1011, %v1033
          %v1042 = vadd.f32 %v1012, %v1034
          %v1043 = vadd.f32 %v1013, %v1035
          %v1044 = vadd.f32 %v1014, %v1036
          %v1045 = vadd.f32 %v1015, %v1037
          %v1046 = vadd.f32 %v1016, %v1038
          %v1047 = vadd.f32 %v1017, %v1039
          %v1048 = vld [vmem:[#allocation2 + $0x2] sm:$0xff]
          %v1049 = vld [vmem:[#allocation2 + $0x12] sm:$0xff]
          %v1050 = vld [vmem:[#allocation2 + $0x22] sm:$0xff]
          %v1051 = vld [vmem:[#allocation2 + $0x32] sm:$0xff]
          %v1052 = vld [vmem:[#allocation2 + $0x42] sm:$0xff]
          %v1053 = vld [vmem:[#allocation2 + $0x52] sm:$0xff]
          %v1054 = vld [vmem:[#allocation2 + $0x62] sm:$0xff]
          %v1055 = vld [vmem:[#allocation2 + $0x72] sm:$0xff]
          %v1057 = vlaneseq
          %v1058 = vshrl.u32 %v1057, 7
          %v1059 = vsub.s32 0, %v1058
          %v1060 = vrot.slane %v448, %v1059
          %v1062 = vmul.f32 %v1048, %v1060
          %v1063 = vmul.f32 %v1049, %v1060
          %v1064 = vmul.f32 %v1050, %v1060
          %v1065 = vmul.f32 %v1051, %v1060
          %v1066 = vmul.f32 %v1052, %v1060
          %v1067 = vmul.f32 %v1053, %v1060
          %v1068 = vmul.f32 %v1054, %v1060
          %v1069 = vmul.f32 %v1055, %v1060
          %v1070 = vadd.f32 %v1040, %v1062
          %v1071 = vadd.f32 %v1041, %v1063
          %v1072 = vadd.f32 %v1042, %v1064
          %v1073 = vadd.f32 %v1043, %v1065
          %v1074 = vadd.f32 %v1044, %v1066
          %v1075 = vadd.f32 %v1045, %v1067
          %v1076 = vadd.f32 %v1046, %v1068
          %v1077 = vadd.f32 %v1047, %v1069
          %v1078 = vld [vmem:[%s987] sm:$0xff]
          %v1079 = vld [vmem:[%s987 + $0x10] sm:$0xff]
          %v1080 = vld [vmem:[%s987 + $0x20] sm:$0xff]
          %v1081 = vld [vmem:[%s987 + $0x30] sm:$0xff]
          %v1082 = vld [vmem:[%s987 + $0x40] sm:$0xff]
          %v1083 = vld [vmem:[%s987 + $0x50] sm:$0xff]
          %v1084 = vld [vmem:[%s987 + $0x60] sm:$0xff]
          %v1085 = vld [vmem:[%s987 + $0x70] sm:$0xff]
          %v1087 = vlaneseq
          %v1088 = vshrl.u32 %v1087, 7
          %v1089 = vsub.s32 0, %v1088
          %v1090 = vrot.slane %v450, %v1089
          %v1092 = vmul.f32 %v1078, %v1090
          %v1093 = vmul.f32 %v1079, %v1090
          %v1094 = vmul.f32 %v1080, %v1090
          %v1095 = vmul.f32 %v1081, %v1090
          %v1096 = vmul.f32 %v1082, %v1090
          %v1097 = vmul.f32 %v1083, %v1090
          %v1098 = vmul.f32 %v1084, %v1090
          %v1099 = vmul.f32 %v1085, %v1090
          %v1100 = vadd.f32 %v1070, %v1092
          %v1101 = vadd.f32 %v1071, %v1093
          %v1102 = vadd.f32 %v1072, %v1094
          %v1103 = vadd.f32 %v1073, %v1095
          %v1104 = vadd.f32 %v1074, %v1096
          %v1105 = vadd.f32 %v1075, %v1097
          %v1106 = vadd.f32 %v1076, %v1098
          %v1107 = vadd.f32 %v1077, %v1099
          %v1108 = vld [vmem:[%s987 + $0x1] sm:$0xff]
          %v1109 = vld [vmem:[%s987 + $0x11] sm:$0xff]
          %v1110 = vld [vmem:[%s987 + $0x21] sm:$0xff]
          %v1111 = vld [vmem:[%s987 + $0x31] sm:$0xff]
          %v1112 = vld [vmem:[%s987 + $0x41] sm:$0xff]
          %v1113 = vld [vmem:[%s987 + $0x51] sm:$0xff]
          %v1114 = vld [vmem:[%s987 + $0x61] sm:$0xff]
          %v1115 = vld [vmem:[%s987 + $0x71] sm:$0xff]
          %v1117 = vlaneseq
          %v1118 = vshrl.u32 %v1117, 7
          %v1119 = vsub.s32 0, %v1118
          %v1120 = vrot.slane %v452, %v1119
          %v1122 = vmul.f32 %v1108, %v1120
          %v1123 = vmul.f32 %v1109, %v1120
          %v1124 = vmul.f32 %v1110, %v1120
          %v1125 = vmul.f32 %v1111, %v1120
          %v1126 = vmul.f32 %v1112, %v1120
          %v1127 = vmul.f32 %v1113, %v1120
          %v1128 = vmul.f32 %v1114, %v1120
          %v1129 = vmul.f32 %v1115, %v1120
          %v1130 = vadd.f32 %v1100, %v1122
          %v1131 = vadd.f32 %v1101, %v1123
          %v1132 = vadd.f32 %v1102, %v1124
          %v1133 = vadd.f32 %v1103, %v1125
          %v1134 = vadd.f32 %v1104, %v1126
          %v1135 = vadd.f32 %v1105, %v1127
          %v1136 = vadd.f32 %v1106, %v1128
          %v1137 = vadd.f32 %v1107, %v1129
          %v1138 = vld [vmem:[%s987 + $0x2] sm:$0xff]
          %v1139 = vld [vmem:[%s987 + $0x12] sm:$0xff]
          %v1140 = vld [vmem:[%s987 + $0x22] sm:$0xff]
          %v1141 = vld [vmem:[%s987 + $0x32] sm:$0xff]
          %v1142 = vld [vmem:[%s987 + $0x42] sm:$0xff]
          %v1143 = vld [vmem:[%s987 + $0x52] sm:$0xff]
          %v1144 = vld [vmem:[%s987 + $0x62] sm:$0xff]
          %v1145 = vld [vmem:[%s987 + $0x72] sm:$0xff]
          %v1147 = vlaneseq
          %v1148 = vshrl.u32 %v1147, 7
          %v1149 = vsub.s32 0, %v1148
          %v1150 = vrot.slane %v454, %v1149
          %v1152 = vmul.f32 %v1138, %v1150
          %v1153 = vmul.f32 %v1139, %v1150
          %v1154 = vmul.f32 %v1140, %v1150
          %v1155 = vmul.f32 %v1141, %v1150
          %v1156 = vmul.f32 %v1142, %v1150
          %v1157 = vmul.f32 %v1143, %v1150
          %v1158 = vmul.f32 %v1144, %v1150
          %v1159 = vmul.f32 %v1145, %v1150
          %v1160 = vadd.f32 %v1130, %v1152
          %v1161 = vadd.f32 %v1131, %v1153
          %v1162 = vadd.f32 %v1132, %v1154
          %v1163 = vadd.f32 %v1133, %v1155
          %v1164 = vadd.f32 %v1134, %v1156
          %v1165 = vadd.f32 %v1135, %v1157
          %v1166 = vadd.f32 %v1136, %v1158
          %v1167 = vadd.f32 %v1137, %v1159
          %s1168 = scalar_lea.vmem [#allocation2], 32
          %v1169 = vld [vmem:[%s1168] sm:$0xff]
          %v1170 = vld [vmem:[%s1168 + $0x10] sm:$0xff]
          %v1171 = vld [vmem:[%s1168 + $0x20] sm:$0xff]
          %v1172 = vld [vmem:[%s1168 + $0x30] sm:$0xff]
          %v1173 = vld [vmem:[%s1168 + $0x40] sm:$0xff]
          %v1174 = vld [vmem:[%s1168 + $0x50] sm:$0xff]
          %v1175 = vld [vmem:[%s1168 + $0x60] sm:$0xff]
          %v1176 = vld [vmem:[%s1168 + $0x70] sm:$0xff]
          %v1178 = vlaneseq
          %v1179 = vshrl.u32 %v1178, 7
          %v1180 = vsub.s32 0, %v1179
          %v1181 = vrot.slane %v456, %v1180
          %v1183 = vmul.f32 %v1169, %v1181
          %v1184 = vmul.f32 %v1170, %v1181
          %v1185 = vmul.f32 %v1171, %v1181
          %v1186 = vmul.f32 %v1172, %v1181
          %v1187 = vmul.f32 %v1173, %v1181
          %v1188 = vmul.f32 %v1174, %v1181
          %v1189 = vmul.f32 %v1175, %v1181
          %v1190 = vmul.f32 %v1176, %v1181
          %v1191 = vadd.f32 %v1160, %v1183
          %v1192 = vadd.f32 %v1161, %v1184
          %v1193 = vadd.f32 %v1162, %v1185
          %v1194 = vadd.f32 %v1163, %v1186
          %v1195 = vadd.f32 %v1164, %v1187
          %v1196 = vadd.f32 %v1165, %v1188
          %v1197 = vadd.f32 %v1166, %v1189
          %v1198 = vadd.f32 %v1167, %v1190
          %v1199 = vld [vmem:[%s1168 + $0x1] sm:$0xff]
          %v1200 = vld [vmem:[%s1168 + $0x11] sm:$0xff]
          %v1201 = vld [vmem:[%s1168 + $0x21] sm:$0xff]
          %v1202 = vld [vmem:[%s1168 + $0x31] sm:$0xff]
          %v1203 = vld [vmem:[%s1168 + $0x41] sm:$0xff]
          %v1204 = vld [vmem:[%s1168 + $0x51] sm:$0xff]
          %v1205 = vld [vmem:[%s1168 + $0x61] sm:$0xff]
          %v1206 = vld [vmem:[%s1168 + $0x71] sm:$0xff]
          %v1208 = vlaneseq
          %v1209 = vshrl.u32 %v1208, 7
          %v1210 = vsub.s32 0, %v1209
          %v1211 = vrot.slane %v458, %v1210
          %v1213 = vmul.f32 %v1199, %v1211
          %v1214 = vmul.f32 %v1200, %v1211
          %v1215 = vmul.f32 %v1201, %v1211
          %v1216 = vmul.f32 %v1202, %v1211
          %v1217 = vmul.f32 %v1203, %v1211
          %v1218 = vmul.f32 %v1204, %v1211
          %v1219 = vmul.f32 %v1205, %v1211
          %v1220 = vmul.f32 %v1206, %v1211
          %v1221 = vadd.f32 %v1191, %v1213
          %v1222 = vadd.f32 %v1192, %v1214
          %v1223 = vadd.f32 %v1193, %v1215
          %v1224 = vadd.f32 %v1194, %v1216
          %v1225 = vadd.f32 %v1195, %v1217
          %v1226 = vadd.f32 %v1196, %v1218
          %v1227 = vadd.f32 %v1197, %v1219
          %v1228 = vadd.f32 %v1198, %v1220
          %v1229 = vld [vmem:[%s1168 + $0x2] sm:$0xff]
          %v1230 = vld [vmem:[%s1168 + $0x12] sm:$0xff]
          %v1231 = vld [vmem:[%s1168 + $0x22] sm:$0xff]
          %v1232 = vld [vmem:[%s1168 + $0x32] sm:$0xff]
          %v1233 = vld [vmem:[%s1168 + $0x42] sm:$0xff]
          %v1234 = vld [vmem:[%s1168 + $0x52] sm:$0xff]
          %v1235 = vld [vmem:[%s1168 + $0x62] sm:$0xff]
          %v1236 = vld [vmem:[%s1168 + $0x72] sm:$0xff]
          %v1238 = vlaneseq
          %v1239 = vshrl.u32 %v1238, 7
          %v1240 = vsub.s32 0, %v1239
          %v1241 = vrot.slane %v460, %v1240
          %v1243 = vmul.f32 %v1229, %v1241
          %v1244 = vmul.f32 %v1230, %v1241
          %v1245 = vmul.f32 %v1231, %v1241
          %v1246 = vmul.f32 %v1232, %v1241
          %v1247 = vmul.f32 %v1233, %v1241
          %v1248 = vmul.f32 %v1234, %v1241
          %v1249 = vmul.f32 %v1235, %v1241
          %v1250 = vmul.f32 %v1236, %v1241
          %v1251 = vadd.f32 %v1221, %v1243
          %v1252 = vadd.f32 %v1222, %v1244
          %v1253 = vadd.f32 %v1223, %v1245
          %v1254 = vadd.f32 %v1224, %v1246
          %v1255 = vadd.f32 %v1225, %v1247
          %v1256 = vadd.f32 %v1226, %v1248
          %v1257 = vadd.f32 %v1227, %v1249
          %v1258 = vadd.f32 %v1228, %v1250
          %v1260 = vlaneseq
          %v1261 = vshrl.u32 %v1260, 7
          %v1262 = vsub.s32 0, %v1261
          %v1263 = vrot.slane %v928, %v1262
          %v1265 = vmul.f32 %v1251, %v1263
          %v1266 = vmul.f32 %v1252, %v1263
          %v1267 = vmul.f32 %v1253, %v1263
          %v1268 = vmul.f32 %v1254, %v1263
          %v1269 = vmul.f32 %v1255, %v1263
          %v1270 = vmul.f32 %v1256, %v1263
          %v1271 = vmul.f32 %v1257, %v1263
          %v1272 = vmul.f32 %v1258, %v1263
          %v1274 = vlaneseq
          %v1275 = vshrl.u32 %v1274, 7
          %v1276 = vsub.s32 0, %v1275
          %v1277 = vrot.slane %v932, %v1276
          %v1279 = vadd.f32 %v1265, %v1277
          %v1280 = vadd.f32 %v1266, %v1277
          %v1281 = vadd.f32 %v1267, %v1277
          %v1282 = vadd.f32 %v1268, %v1277
          %v1283 = vadd.f32 %v1269, %v1277
          %v1284 = vadd.f32 %v1270, %v1277
          %v1285 = vadd.f32 %v1271, %v1277
          %v1286 = vadd.f32 %v1272, %v1277
          %s1287 = scalar_lea.vmem %s414, %s977 [#allocation12]
          %1288 = vst [vmem:[%s1287] sm:$0xff] %v1279
          %1289 = vst [vmem:[%s1287 + $0x8] sm:$0xff] %v1280
          %1290 = vst [vmem:[%s1287 + $0x10] sm:$0xff] %v1281
          %1291 = vst [vmem:[%s1287 + $0x18] sm:$0xff] %v1282
          %1292 = vst [vmem:[%s1287 + $0x20] sm:$0xff] %v1283
          %1293 = vst [vmem:[%s1287 + $0x28] sm:$0xff] %v1284
          %1294 = vst [vmem:[%s1287 + $0x30] sm:$0xff] %v1285
          %1295 = vst [vmem:[%s1287 + $0x38] sm:$0xff] %v1286
        $region72: #{tpu_custom_call.1} parent=47 // loop_footer
          %s976 = sadd.s32 1, %s972
        $region73: #{tpu_custom_call.1} parent=47 // loop_footer_branch
          %971 = sbr.rel target = $region69
        $region74: #{tpu_custom_call.1} parent=47 // loop_exit
          _
        %s1296 = sand.u32 %s217, 1
        %s1297 = scalar_lea.sflag [#allocation8], %s1296
        %s1298 = sand.u32 %s217, 1
        %s1299 = smul.addr %s1298, 512
        %s1300 = scalar_lea.vmem [#allocation12], %s1299
        // Predicated region
        $region75: #{tpu_custom_call.1} parent=47 // pred_check
          %p1301 = pneg %p227
        $region76: #{tpu_custom_call.1} parent=47 // pred_check_branch
          %1303 = sbr.rel (%p1301) target = $region78
        $region77: #{tpu_custom_call.1} parent=47 // pred_region
          %s1305 = ssub.s32 8192, 8192
          %1306 = vsyncadd %s1297, %s1305
          %s1307 = smul.addr %s27, 128
          %s1308 = scalar_lea.hbm %s7, %s1307
          %s1309 = sshll.u32 %s1300, 4
          %s1310 = int_to_ptr.vmem [resolvable:$true] %s1309
          %1315 = dma.vmem_to_hbm [thread:$0]  %s1310, 8192, %s1308, %s1297, 128, 256, 8
        $region78: #{tpu_custom_call.1} parent=47 // pred_fallthru
          _
      $region48: #{tpu_custom_call.1} parent=5 // pred_fallthru
        _
      %p1316 = scmp.le.s32.totalorder 2, %s22
      // Predicated region
      $region79: #{tpu_custom_call.1} parent=5 // pred_check
        %p1317 = pneg %p1316
      $region80: #{tpu_custom_call.1} parent=5 // pred_check_branch
        %1319 = sbr.rel (%p1317) target = $region82
      $region81: #{tpu_custom_call.1} parent=5 // pred_region
        %s1320 = ssub.s32 %s22, 2
        // Predicated region
        $region83: #{tpu_custom_call.1} parent=81 // pred_check
          %p1321 = pneg %p233
        $region84: #{tpu_custom_call.1} parent=81 // pred_check_branch
          %1323 = sbr.rel (%p1321) target = $region86
        $region85: #{tpu_custom_call.1} parent=81 // pred_region
          %s1324 = sand.u32 %s218, 1
          %s1325 = scalar_lea.sflag [#allocation8], %s1324
          %s1326 = sand.u32 %s218, 1
          %s1327 = smul.addr %s1326, 512
          %s1328 = scalar_lea.vmem [#allocation12], %s1327
          %1329 = dma.done %s1325, 8192
        $region86: #{tpu_custom_call.1} parent=81 // pred_fallthru
          _
      $region82: #{tpu_custom_call.1} parent=5 // pred_fallthru
        _
    $region6: #{tpu_custom_call.1} parent=1 // loop_footer
      %s26 = sadd.s32 1, %s22
    $region7: #{tpu_custom_call.1} parent=1 // loop_footer_branch
      %21 = sbr.rel target = $region3
    $region8: #{tpu_custom_call.1} parent=1 // loop_exit
      _
    %1330 = vsyncpa [#allocation7], 1
    %s1331 = scalar_lea.sflag [#allocation7], 1
    %1332 = vsyncpa %s1331, 1
    %1333 = vsyncpa [#allocation10], 1
    %s1334 = scalar_lea.sflag [#allocation10], 1
    %1335 = vsyncpa %s1334, 1
    %1336 = vsyncpa [#allocation8], 1
    %s1337 = scalar_lea.sflag [#allocation8], 1
    %1338 = vsyncpa %s1337, 1

</llo_original>
